<compile_context>
chip_gen: v6e
topology: v6e:2x2x1
jax: 0.10.0
libtpu: 0.0.40
codegen_flags: <defaults>
</compile_context>

<pallas_src>
import jax
import jax.numpy as jnp
from jax.experimental import pallas as pl
from jax.experimental.pallas import tpu as pltpu


def _make_kernel(use_struct, use_seq, matmul_dtype, lane_dense):
    """Kernel signature matches exactly the operands the wrapper passes."""

    def kernel(*refs):
        h_ref = refs[-1]                      # (1, TB) if lane_dense else (TB, 1)
        tb = h_ref.shape[1] if lane_dense else h_ref.shape[0]
        zshape = (tb,) if lane_dense else (tb, 1)
        keep = not lane_dense

        h1 = jnp.zeros(zshape, jnp.float32)
        h2 = jnp.zeros(zshape, jnp.float32)
        i = 0

        if use_struct:
            gAB_ref, gAG_ref, wAB_ref, bAB_ref, wAG_ref, bAG_ref = refs[i:i + 6]
            i += 6
            gAB, gAG = gAB_ref[...], gAG_ref[...]
            wAB, wAG = wAB_ref[...], wAG_ref[...]
            if matmul_dtype is not None:
                # in-kernel cast: VPU work overlapped with DMA, no extra HBM pass
                gAB, gAG = gAB.astype(matmul_dtype), gAG.astype(matmul_dtype)
                wAB, wAG = wAB.astype(matmul_dtype), wAG.astype(matmul_dtype)
            pAB = jnp.dot(gAB, wAB, preferred_element_type=jnp.float32) + bAB_ref[...]
            pAG = jnp.dot(gAG, wAG, preferred_element_type=jnp.float32) + bAG_ref[...]
            # torch.diag(pAB @ pAG.T) == row-wise dot (lane reduce)
            h1 = jnp.sum(pAB * pAG, axis=-1, keepdims=keep)
            # TODO(synk): for very large projection dim P on v7x, chunk the P
            # axis here (loop over 128-wide slabs accumulating into h1) to cap
            # the live f32 (TB, P) intermediates; unnecessary at these sizes.

        if use_seq:
            sAB_ref, sAG_ref = refs[i:i + 2]
            i += 2
            h2 = jnp.sum(sAB_ref[...].astype(jnp.float32) *
                         sAG_ref[...].astype(jnp.float32),
                         axis=-1, keepdims=keep)

        # torch always concatenates exactly two (B,1) columns (the disabled
        # branch is the pre-initialized zeros tensor), so mean(dim=1) is
        # 0.5*(h1+h2) for every flag combination.
        h = 0.5 * (h1 + h2)
        h_ref[...] = h.reshape(1, tb) if lane_dense else h

    return kernel


def _vmem_capacity_bytes():
    try:
        return int(pltpu.get_tpu_info().vmem_capacity_bytes)
    except Exception:
        return 64 * 1024 * 1024   # conservative default = v7x per-TensorCore VMEM


def struct_seq_enc(gAB, gAG, sAB, sAG, wAB, bAB, wAG, bAG, *,
                   use_struct=True, use_seq=False,
                   matmul_dtype=None, block_b=None):
    """StructSeqEnc.forward hot path.

    gAB, gAG : (B, D)  graph-level embeddings (ignored if use_struct=False)
    sAB, sAG : (B, Ps) sequence embeddings    (ignored if use_seq=False)
    wAB, wAG : (D, P)  projection-head weights; bAB/bAG biases (P,) or (1, P)
    matmul_dtype : None (f32, torch-faithful) or e.g. jnp.bfloat16 (in-kernel cast)
    returns  : (B, 1) float32
    """
    B = int(gAB.shape[0]) if use_struct else int(sAB.shape[0])
    if not use_struct and not use_seq:
        # torch cats two zero columns -> mean is zeros
        return jnp.zeros((B, 1), jnp.float32)

    args = []
    # ---- VMEM footprint model (bytes per batch row / resident bytes) ----
    row_bytes = 4 * 4                      # output + small slack
    resident_bytes = 0
    if use_struct:
        D, P = int(wAB.shape[0]), int(wAB.shape[1])
        row_bytes += 2 * 2 * D * gAB.dtype.itemsize    # gAB/gAG, double-buffered
        row_bytes += 3 * P * 4                         # live f32 pAB, pAG, pAB*pAG
        if matmul_dtype is not None:
            row_bytes += 2 * D * jnp.zeros((), matmul_dtype).dtype.itemsize
        resident_bytes += 2 * 2 * (D * P + P) * max(wAB.dtype.itemsize, 4)
        bAB2 = jnp.asarray(bAB, jnp.float32).reshape(1, P)
        bAG2 = jnp.asarray(bAG, jnp.float32).reshape(1, P)
        args += [gAB, gAG, wAB, bAB2, wAG, bAG2]
    if use_seq:
        Ps = int(sAB.shape[1])
        row_bytes += 2 * 2 * Ps * sAB.dtype.itemsize   # sAB/sAG, double-buffered
        row_bytes += 2 * Ps * 4                        # in-kernel f32 upcasts
        args += [sAB, sAG]

    # ---- batch tile from the chip's actual VMEM capacity ----
    vmem_cap = _vmem_capacity_bytes()
    budget = int(0.70 * vmem_cap)          # headroom for compiler-internal scratch
    fit_rows = max(128, (budget - resident_bytes) // max(row_bytes, 1))
    if block_b is not None:
        fit_rows = min(fit_rows, int(block_b))
    if B <= fit_rows:
        TB = B                             # single grid step: blocks == full extents
    else:
        TB = max(128, (min(fit_rows, B) // 128) * 128)   # 128-multiple: lane-dense
    n_tiles = pl.cdiv(B, TB)               # ragged last tile handled by Pallas

    est_bytes = resident_bytes + TB * row_bytes
    vmem_limit = int(min(vmem_cap,
                         max(32 * 1024 * 1024, int(1.5 * est_bytes) + (4 << 20))))

    def _build(lane_dense, single_buffer_weights):
        def resident(shape):
            if single_buffer_weights:
                # constant-index blocks are never re-fetched: 1 buffer is enough
                return pl.BlockSpec(shape, lambda i: (0, 0),
                                    pipeline_mode=pl.Buffered(1))
            return pl.BlockSpec(shape, lambda i: (0, 0))

        in_specs = []
        if use_struct:
            in_specs += [pl.BlockSpec((TB, D), lambda i: (i, 0)),
                         pl.BlockSpec((TB, D), lambda i: (i, 0)),
                         resident((D, P)), resident((1, P)),
                         resident((D, P)), resident((1, P))]
        if use_seq:
            in_specs += [pl.BlockSpec((TB, Ps), lambda i: (i, 0)),
                         pl.BlockSpec((TB, Ps), lambda i: (i, 0))]
        if lane_dense:
            out_shape = jax.ShapeDtypeStruct((1, B), jnp.float32)
            out_spec = pl.BlockSpec((1, TB), lambda i: (0, i))
        else:
            out_shape = jax.ShapeDtypeStruct((B, 1), jnp.float32)
            out_spec = pl.BlockSpec((TB, 1), lambda i: (i, 0))
        return pl.pallas_call(
            _make_kernel(use_struct, use_seq, matmul_dtype, lane_dense),
            out_shape=out_shape,
            grid=(n_tiles,),
            in_specs=in_specs,
            out_specs=out_spec,
            compiler_params=pltpu.CompilerParams(
                dimension_semantics=("parallel",),   # batch tiles across TCs
                vmem_limit_bytes=vmem_limit),
        )

    # Primary: lane-dense output + single-buffered resident weights.  Fall back
    # to default buffering, then to a plain column output, if the installed
    # JAX/Mosaic build rejects either perf hint.  All variants are numerically
    # identical; only buffering / output layout differ.
    attempts = ((True, True), (True, False), (False, False))
    out = None
    for idx, (lane_dense, single_buf) in enumerate(attempts):
        try:
            out = _build(lane_dense, single_buf)(*args)
            break
        except Exception:
            if idx == len(attempts) - 1:
                raise

    return out.reshape(B, 1)


if __name__ == "__main__":
    # small, deterministic example shapes
    B, N, Fin, D, P, Ps, L, V = 16, 16, 32, 32, 48, 40, 12, 24

    key = jax.random.PRNGKey(0)
    ks = jax.random.split(key, 10)

    # raw module inputs: graph node features + token ids
    XAB = jax.random.normal(ks[0], (B, N, Fin), jnp.float32)        # "GAB"
    XAG = jax.random.normal(ks[1], (B, N, Fin), jnp.float32)        # "GAG"
    tokenAB = jax.random.randint(ks[2], (B, L), 0, V)
    tokenAG = jax.random.randint(ks[3], (B, L), 0, V)

    # deterministic synthetic parameters
    Wg_AB = 0.1 * jax.random.normal(ks[4], (Fin, D), jnp.float32)   # struct encoder AB
    Wg_AG = 0.1 * jax.random.normal(ks[5], (Fin, D), jnp.float32)   # struct encoder AG
    Wproj_AB = 0.1 * jax.random.normal(ks[6], (D, P), jnp.float32)  # encoderAB.project
    bproj_AB = 0.05 * jnp.ones((1, P), jnp.float32)
    Wproj_AG = 0.1 * jax.random.normal(ks[7], (D, P), jnp.float32)  # encoderAG.project
    bproj_AG = -0.05 * jnp.ones((1, P), jnp.float32)
    Emb_AB = 0.5 * jax.random.normal(ks[8], (V, Ps), jnp.float32)   # seq_encAB
    Emb_AG = 0.5 * jax.random.normal(ks[9], (V, Ps), jnp.float32)   # seq_encAG

    # ----- plain-JAX glue for the injected encoder submodules -----
    # TODO(synk): struct_enc / seq_encAB / seq_encAG are arbitrary injected
    # submodules (GNN / sequence encoders); modeled as deterministic plain-JAX
    # glue here.  The Pallas kernel covers StructSeqEnc.forward's own compute
    # (projection heads + diagonal dot products + mean).
    gAB = jnp.mean(jax.nn.relu(XAB @ Wg_AB), axis=1)   # (B, D) graph readout
    gAG = jnp.mean(jax.nn.relu(XAG @ Wg_AG), axis=1)   # (B, D)
    sAB = jnp.mean(Emb_AB[tokenAB], axis=1)            # (B, Ps) seq embedding
    sAG = jnp.mean(Emb_AG[tokenAG], axis=1)            # (B, Ps)

    # ----- Pallas kernel: StructSeqEnc.forward hot path -----
    h = struct_seq_enc(gAB, gAG, sAB, sAG,
                       Wproj_AB, bproj_AB, Wproj_AG, bproj_AG,
                       use_struct=True, use_seq=True)
    jax.block_until_ready(h)
    assert h.shape == (B, 1), h.shape

    # pure-JAX f32 reference (torch-faithful math)
    pAB = gAB @ Wproj_AB + bproj_AB
    pAG = gAG @ Wproj_AG + bproj_AG
    h1 = jnp.sum(pAB * pAG, axis=-1, keepdims=True)
    h2 = jnp.sum(sAB * sAG, axis=-1, keepdims=True)
    h_ref = 0.5 * (h1 + h2)
    assert jnp.allclose(h, h_ref, atol=1e-2, rtol=1e-2)

    # default-constructor path (use_struct=True, use_seq=False): torch still
    # cats the zeros h2 column, so the expected result is 0.5*h1.
    h_struct_only = struct_seq_enc(gAB, gAG, sAB, sAG,
                                   Wproj_AB, bproj_AB, Wproj_AG, bproj_AG,
                                   use_struct=True, use_seq=False)
    jax.block_until_ready(h_struct_only)
    assert jnp.allclose(h_struct_only, 0.5 * h1, atol=1e-2, rtol=1e-2)

    # seq-only path (h1 stays zeros -> 0.5*h2); pure f32 elementwise, tight tol
    h_seq_only = struct_seq_enc(gAB, gAG, sAB, sAG,
                                Wproj_AB, bproj_AB, Wproj_AG, bproj_AG,
                                use_struct=False, use_seq=True)
    jax.block_until_ready(h_seq_only)
    assert jnp.allclose(h_seq_only, 0.5 * h2, atol=1e-4, rtol=1e-4)

    print("KERNEL_OK")
</pallas_src>

<mosaic_0001>
module attributes {stable_mosaic.version = 11 : i64} {
  func.func @kernel(%arg0: i32, %arg1: memref<16x32xf32, #tpu.memory_space<vmem>>, %arg2: memref<16x32xf32, #tpu.memory_space<vmem>>, %arg3: memref<32x48xf32, #tpu.memory_space<vmem>>, %arg4: memref<1x48xf32, #tpu.memory_space<vmem>>, %arg5: memref<32x48xf32, #tpu.memory_space<vmem>>, %arg6: memref<1x48xf32, #tpu.memory_space<vmem>>, %arg7: memref<16x40xf32, #tpu.memory_space<vmem>>, %arg8: memref<16x40xf32, #tpu.memory_space<vmem>>, %arg9: memref<1x16xf32, #tpu.memory_space<vmem>>) attributes {dimension_semantics = [#tpu.dimension_semantics<parallel>], iteration_bounds = array<i64: 1>, scalar_prefetch = 0 : i64, scratch_operands = 0 : i64, tpu.core_type = #tpu.core_type<tc>, window_params = [{transform_indices = @transform_0, window_bounds = array<i64: 16, 32>}, {transform_indices = @transform_1, window_bounds = array<i64: 16, 32>}, {pipeline_mode = #tpu.pipeline_mode<synchronous>, transform_indices = @transform_2, window_bounds = array<i64: 32, 48>}, {pipeline_mode = #tpu.pipeline_mode<synchronous>, transform_indices = @transform_3, window_bounds = array<i64: 1, 48>}, {pipeline_mode = #tpu.pipeline_mode<synchronous>, transform_indices = @transform_4, window_bounds = array<i64: 32, 48>}, {pipeline_mode = #tpu.pipeline_mode<synchronous>, transform_indices = @transform_5, window_bounds = array<i64: 1, 48>}, {transform_indices = @transform_6, window_bounds = array<i64: 16, 40>}, {transform_indices = @transform_7, window_bounds = array<i64: 16, 40>}, {transform_indices = @transform_8, window_bounds = array<i64: 1, 16>}]} {
    %c0 = arith.constant 0 : index
    %c0_0 = arith.constant 0 : index
    %0 = vector.load %arg1[%c0, %c0_0] : memref<16x32xf32, #tpu.memory_space<vmem>>, vector<16x32xf32>
    %c0_1 = arith.constant 0 : index
    %c0_2 = arith.constant 0 : index
    %1 = vector.load %arg2[%c0_1, %c0_2] : memref<16x32xf32, #tpu.memory_space<vmem>>, vector<16x32xf32>
    %c0_3 = arith.constant 0 : index
    %c0_4 = arith.constant 0 : index
    %2 = vector.load %arg3[%c0_3, %c0_4] : memref<32x48xf32, #tpu.memory_space<vmem>>, vector<32x48xf32>
    %c0_5 = arith.constant 0 : index
    %c0_6 = arith.constant 0 : index
    %3 = vector.load %arg5[%c0_5, %c0_6] : memref<32x48xf32, #tpu.memory_space<vmem>>, vector<32x48xf32>
    %cst = arith.constant dense<0.000000e+00> : vector<16x48xf32>
    %4 = tpu.matmul %0, %2, %cst {dimension_numbers = #tpu.dot_dimension_numbers<[1], [0], [0], [1], [0, 0, 1, 1], [], []>} : vector<16x32xf32>, vector<32x48xf32>, vector<16x48xf32> -> vector<16x48xf32>
    %c0_7 = arith.constant 0 : index
    %c0_8 = arith.constant 0 : index
    %5 = vector.load %arg4[%c0_7, %c0_8] : memref<1x48xf32, #tpu.memory_space<vmem>>, vector<1x48xf32>
    %6 = vector.broadcast %5 : vector<1x48xf32> to vector<16x48xf32>
    %7 = arith.addf %4, %6 : vector<16x48xf32>
    %cst_9 = arith.constant dense<0.000000e+00> : vector<16x48xf32>
    %8 = tpu.matmul %1, %3, %cst_9 {dimension_numbers = #tpu.dot_dimension_numbers<[1], [0], [0], [1], [0, 0, 1, 1], [], []>} : vector<16x32xf32>, vector<32x48xf32>, vector<16x48xf32> -> vector<16x48xf32>
    %c0_10 = arith.constant 0 : index
    %c0_11 = arith.constant 0 : index
    %9 = vector.load %arg6[%c0_10, %c0_11] : memref<1x48xf32, #tpu.memory_space<vmem>>, vector<1x48xf32>
    %10 = vector.broadcast %9 : vector<1x48xf32> to vector<16x48xf32>
    %11 = arith.addf %8, %10 : vector<16x48xf32>
    %12 = arith.mulf %7, %11 : vector<16x48xf32>
    %cst_12 = arith.constant dense<0.000000e+00> : vector<16xf32>
    %13 = vector.multi_reduction <add>, %12, %cst_12 [1] : vector<16x48xf32> to vector<16xf32>
    %c0_13 = arith.constant 0 : index
    %c0_14 = arith.constant 0 : index
    %14 = vector.load %arg7[%c0_13, %c0_14] : memref<16x40xf32, #tpu.memory_space<vmem>>, vector<16x40xf32>
    %c0_15 = arith.constant 0 : index
    %c0_16 = arith.constant 0 : index
    %15 = vector.load %arg8[%c0_15, %c0_16] : memref<16x40xf32, #tpu.memory_space<vmem>>, vector<16x40xf32>
    %16 = arith.mulf %14, %15 : vector<16x40xf32>
    %cst_17 = arith.constant dense<0.000000e+00> : vector<16xf32>
    %17 = vector.multi_reduction <add>, %16, %cst_17 [1] : vector<16x40xf32> to vector<16xf32>
    %18 = arith.addf %13, %17 : vector<16xf32>
    %cst_18 = arith.constant 5.000000e-01 : f32
    %19 = vector.broadcast %cst_18 : f32 to vector<16xf32>
    %20 = arith.mulf %19, %18 : vector<16xf32>
    %21 = vector.shape_cast %20 : vector<16xf32> to vector<1x16xf32>
    %c0_19 = arith.constant 0 : index
    %c0_20 = arith.constant 0 : index
    %22 = vector.load %arg9[%c0_19, %c0_20] : memref<1x16xf32, #tpu.memory_space<vmem>>, vector<1x16xf32>
    tpu.vector_store %arg9[%c0_19, %c0_20], %21 {strides = array<i32>} : memref<1x16xf32, #tpu.memory_space<vmem>>, vector<1x16xf32>,
    return
  }
  func.func @transform_0(%arg0: i32) -> (i32, i32) {
    %c0_i32 = arith.constant 0 : i32
    %c0_i32_0 = arith.constant 0 : i32
    return %arg0, %c0_i32 : i32, i32
  }
  func.func @transform_1(%arg0: i32) -> (i32, i32) {
    %c0_i32 = arith.constant 0 : i32
    %c0_i32_0 = arith.constant 0 : i32
    return %arg0, %c0_i32 : i32, i32
  }
  func.func @transform_2(%arg0: i32) -> (i32, i32) {
    %c0_i32 = arith.constant 0 : i32
    %c0_i32_0 = arith.constant 0 : i32
    %c0_i32_1 = arith.constant 0 : i32
    return %c0_i32, %c0_i32_0 : i32, i32
  }
  func.func @transform_3(%arg0: i32) -> (i32, i32) {
    %c0_i32 = arith.constant 0 : i32
    %c0_i32_0 = arith.constant 0 : i32
    %c0_i32_1 = arith.constant 0 : i32
    return %c0_i32, %c0_i32_0 : i32, i32
  }
  func.func @transform_4(%arg0: i32) -> (i32, i32) {
    %c0_i32 = arith.constant 0 : i32
    %c0_i32_0 = arith.constant 0 : i32
    %c0_i32_1 = arith.constant 0 : i32
    return %c0_i32, %c0_i32_0 : i32, i32
  }
  func.func @transform_5(%arg0: i32) -> (i32, i32) {
    %c0_i32 = arith.constant 0 : i32
    %c0_i32_0 = arith.constant 0 : i32
    %c0_i32_1 = arith.constant 0 : i32
    return %c0_i32, %c0_i32_0 : i32, i32
  }
  func.func @transform_6(%arg0: i32) -> (i32, i32) {
    %c0_i32 = arith.constant 0 : i32
    %c0_i32_0 = arith.constant 0 : i32
    return %arg0, %c0_i32 : i32, i32
  }
  func.func @transform_7(%arg0: i32) -> (i32, i32) {
    %c0_i32 = arith.constant 0 : i32
    %c0_i32_0 = arith.constant 0 : i32
    return %arg0, %c0_i32 : i32, i32
  }
  func.func @transform_8(%arg0: i32) -> (i32, i32) {
    %c0_i32 = arith.constant 0 : i32
    %c0_i32_0 = arith.constant 0 : i32
    return %c0_i32, %arg0 : i32, i32
  }
}

module attributes {stable_mosaic.version = 11 : i64} {
  func.func @kernel(%arg0: i32, %arg1: memref<16x32xf32, #tpu.memory_space<vmem>>, %arg2: memref<16x32xf32, #tpu.memory_space<vmem>>, %arg3: memref<32x48xf32, #tpu.memory_space<vmem>>, %arg4: memref<1x48xf32, #tpu.memory_space<vmem>>, %arg5: memref<32x48xf32, #tpu.memory_space<vmem>>, %arg6: memref<1x48xf32, #tpu.memory_space<vmem>>, %arg7: memref<16x40xf32, #tpu.memory_space<vmem>>, %arg8: memref<16x40xf32, #tpu.memory_space<vmem>>, %arg9: memref<1x16xf32, #tpu.memory_space<vmem>>) attributes {dimension_semantics = [#tpu.dimension_semantics<parallel>], iteration_bounds = array<i64: 1>, scalar_prefetch = 0 : i64, scratch_operands = 0 : i64, tpu.core_type = #tpu.core_type<tc>, window_params = [{transform_indices = @transform_0, window_bounds = array<i64: 16, 32>}, {transform_indices = @transform_1, window_bounds = array<i64: 16, 32>}, {pipeline_mode = #tpu.pipeline_mode<synchronous>, transform_indices = @transform_2, window_bounds = array<i64: 32, 48>}, {pipeline_mode = #tpu.pipeline_mode<synchronous>, transform_indices = @transform_3, window_bounds = array<i64: 1, 48>}, {pipeline_mode = #tpu.pipeline_mode<synchronous>, transform_indices = @transform_4, window_bounds = array<i64: 32, 48>}, {pipeline_mode = #tpu.pipeline_mode<synchronous>, transform_indices = @transform_5, window_bounds = array<i64: 1, 48>}, {transform_indices = @transform_6, window_bounds = array<i64: 16, 40>}, {transform_indices = @transform_7, window_bounds = array<i64: 16, 40>}, {transform_indices = @transform_8, window_bounds = array<i64: 1, 16>}]} {
    %c0 = arith.constant 0 : index
    %c0_0 = arith.constant 0 : index
    %0 = vector.load %arg1[%c0, %c0_0] : memref<16x32xf32, #tpu.memory_space<vmem>>, vector<16x32xf32>
    %c0_1 = arith.constant 0 : index
    %c0_2 = arith.constant 0 : index
    %1 = vector.load %arg2[%c0_1, %c0_2] : memref<16x32xf32, #tpu.memory_space<vmem>>, vector<16x32xf32>
    %c0_3 = arith.constant 0 : index
    %c0_4 = arith.constant 0 : index
    %2 = vector.load %arg3[%c0_3, %c0_4] : memref<32x48xf32, #tpu.memory_space<vmem>>, vector<32x48xf32>
    %c0_5 = arith.constant 0 : index
    %c0_6 = arith.constant 0 : index
    %3 = vector.load %arg5[%c0_5, %c0_6] : memref<32x48xf32, #tpu.memory_space<vmem>>, vector<32x48xf32>
    %cst = arith.constant dense<0.000000e+00> : vector<16x48xf32>
    %4 = tpu.matmul %0, %2, %cst {dimension_numbers = #tpu.dot_dimension_numbers<[1], [0], [0], [1], [0, 0, 1, 1], [], []>} : vector<16x32xf32>, vector<32x48xf32>, vector<16x48xf32> -> vector<16x48xf32>
    %c0_7 = arith.constant 0 : index
    %c0_8 = arith.constant 0 : index
    %5 = vector.load %arg4[%c0_7, %c0_8] : memref<1x48xf32, #tpu.memory_space<vmem>>, vector<1x48xf32>
    %6 = vector.broadcast %5 : vector<1x48xf32> to vector<16x48xf32>
    %7 = arith.addf %4, %6 : vector<16x48xf32>
    %cst_9 = arith.constant dense<0.000000e+00> : vector<16x48xf32>
    %8 = tpu.matmul %1, %3, %cst_9 {dimension_numbers = #tpu.dot_dimension_numbers<[1], [0], [0], [1], [0, 0, 1, 1], [], []>} : vector<16x32xf32>, vector<32x48xf32>, vector<16x48xf32> -> vector<16x48xf32>
    %c0_10 = arith.constant 0 : index
    %c0_11 = arith.constant 0 : index
    %9 = vector.load %arg6[%c0_10, %c0_11] : memref<1x48xf32, #tpu.memory_space<vmem>>, vector<1x48xf32>
    %10 = vector.broadcast %9 : vector<1x48xf32> to vector<16x48xf32>
    %11 = arith.addf %8, %10 : vector<16x48xf32>
    %12 = arith.mulf %7, %11 : vector<16x48xf32>
    %cst_12 = arith.constant dense<0.000000e+00> : vector<16xf32>
    %13 = vector.multi_reduction <add>, %12, %cst_12 [1] : vector<16x48xf32> to vector<16xf32>
    %c0_13 = arith.constant 0 : index
    %c0_14 = arith.constant 0 : index
    %14 = vector.load %arg7[%c0_13, %c0_14] : memref<16x40xf32, #tpu.memory_space<vmem>>, vector<16x40xf32>
    %c0_15 = arith.constant 0 : index
    %c0_16 = arith.constant 0 : index
    %15 = vector.load %arg8[%c0_15, %c0_16] : memref<16x40xf32, #tpu.memory_space<vmem>>, vector<16x40xf32>
    %16 = arith.mulf %14, %15 : vector<16x40xf32>
    %cst_17 = arith.constant dense<0.000000e+00> : vector<16xf32>
    %17 = vector.multi_reduction <add>, %16, %cst_17 [1] : vector<16x40xf32> to vector<16xf32>
    %18 = arith.addf %13, %17 : vector<16xf32>
    %cst_18 = arith.constant 5.000000e-01 : f32
    %19 = vector.broadcast %cst_18 : f32 to vector<16xf32>
    %20 = arith.mulf %19, %18 : vector<16xf32>
    %21 = vector.shape_cast %20 : vector<16xf32> to vector<1x16xf32>
    %c0_19 = arith.constant 0 : index
    %c0_20 = arith.constant 0 : index
    %22 = vector.load %arg9[%c0_19, %c0_20] : memref<1x16xf32, #tpu.memory_space<vmem>>, vector<1x16xf32>
    tpu.vector_store %arg9[%c0_19, %c0_20], %21 {strides = array<i32>} : memref<1x16xf32, #tpu.memory_space<vmem>>, vector<1x16xf32>,
    return
  }
  func.func @transform_0(%arg0: i32) -> (i32, i32) {
    %c0_i32 = arith.constant 0 : i32
    %c0_i32_0 = arith.constant 0 : i32
    return %arg0, %c0_i32 : i32, i32
  }
  func.func @transform_1(%arg0: i32) -> (i32, i32) {
    %c0_i32 = arith.constant 0 : i32
    %c0_i32_0 = arith.constant 0 : i32
    return %arg0, %c0_i32 : i32, i32
  }
  func.func @transform_2(%arg0: i32) -> (i32, i32) {
    %c0_i32 = arith.constant 0 : i32
    %c0_i32_0 = arith.constant 0 : i32
    %c0_i32_1 = arith.constant 0 : i32
    return %c0_i32, %c0_i32_0 : i32, i32
  }
  func.func @transform_3(%arg0: i32) -> (i32, i32) {
    %c0_i32 = arith.constant 0 : i32
    %c0_i32_0 = arith.constant 0 : i32
    %c0_i32_1 = arith.constant 0 : i32
    return %c0_i32, %c0_i32_0 : i32, i32
  }
  func.func @transform_4(%arg0: i32) -> (i32, i32) {
    %c0_i32 = arith.constant 0 : i32
    %c0_i32_0 = arith.constant 0 : i32
    %c0_i32_1 = arith.constant 0 : i32
    return %c0_i32, %c0_i32_0 : i32, i32
  }
  func.func @transform_5(%arg0: i32) -> (i32, i32) {
    %c0_i32 = arith.constant 0 : i32
    %c0_i32_0 = arith.constant 0 : i32
    %c0_i32_1 = arith.constant 0 : i32
    return %c0_i32, %c0_i32_0 : i32, i32
  }
  func.func @transform_6(%arg0: i32) -> (i32, i32) {
    %c0_i32 = arith.constant 0 : i32
    %c0_i32_0 = arith.constant 0 : i32
    return %arg0, %c0_i32 : i32, i32
  }
  func.func @transform_7(%arg0: i32) -> (i32, i32) {
    %c0_i32 = arith.constant 0 : i32
    %c0_i32_0 = arith.constant 0 : i32
    return %arg0, %c0_i32 : i32, i32
  }
  func.func @transform_8(%arg0: i32) -> (i32, i32) {
    %c0_i32 = arith.constant 0 : i32
    %c0_i32_0 = arith.constant 0 : i32
    return %c0_i32, %arg0 : i32, i32
  }
}

module attributes {stable_mosaic.version = 11 : i64} {
  func.func @kernel(%arg0: i32, %arg1: memref<16x32xf32, #tpu.memory_space<vmem>>, %arg2: memref<16x32xf32, #tpu.memory_space<vmem>>, %arg3: memref<32x48xf32, #tpu.memory_space<vmem>>, %arg4: memref<1x48xf32, #tpu.memory_space<vmem>>, %arg5: memref<32x48xf32, #tpu.memory_space<vmem>>, %arg6: memref<1x48xf32, #tpu.memory_space<vmem>>, %arg7: memref<16x40xf32, #tpu.memory_space<vmem>>, %arg8: memref<16x40xf32, #tpu.memory_space<vmem>>, %arg9: memref<16x1xf32, #tpu.memory_space<vmem>>) attributes {dimension_semantics = [#tpu.dimension_semantics<parallel>], iteration_bounds = array<i64: 1>, scalar_prefetch = 0 : i64, scratch_operands = 0 : i64, tpu.core_type = #tpu.core_type<tc>, window_params = [{transform_indices = @transform_0, window_bounds = array<i64: 16, 32>}, {transform_indices = @transform_1, window_bounds = array<i64: 16, 32>}, {pipeline_mode = #tpu.pipeline_mode<synchronous>, transform_indices = @transform_2, window_bounds = array<i64: 32, 48>}, {pipeline_mode = #tpu.pipeline_mode<synchronous>, transform_indices = @transform_3, window_bounds = array<i64: 1, 48>}, {pipeline_mode = #tpu.pipeline_mode<synchronous>, transform_indices = @transform_4, window_bounds = array<i64: 32, 48>}, {pipeline_mode = #tpu.pipeline_mode<synchronous>, transform_indices = @transform_5, window_bounds = array<i64: 1, 48>}, {transform_indices = @transform_6, window_bounds = array<i64: 16, 40>}, {transform_indices = @transform_7, window_bounds = array<i64: 16, 40>}, {transform_indices = @transform_8, window_bounds = array<i64: 16, 1>}]} {
    %c0 = arith.constant 0 : index
    %c0_0 = arith.constant 0 : index
    %0 = vector.load %arg1[%c0, %c0_0] : memref<16x32xf32, #tpu.memory_space<vmem>>, vector<16x32xf32>
    %c0_1 = arith.constant 0 : index
    %c0_2 = arith.constant 0 : index
    %1 = vector.load %arg2[%c0_1, %c0_2] : memref<16x32xf32, #tpu.memory_space<vmem>>, vector<16x32xf32>
    %c0_3 = arith.constant 0 : index
    %c0_4 = arith.constant 0 : index
    %2 = vector.load %arg3[%c0_3, %c0_4] : memref<32x48xf32, #tpu.memory_space<vmem>>, vector<32x48xf32>
    %c0_5 = arith.constant 0 : index
    %c0_6 = arith.constant 0 : index
    %3 = vector.load %arg5[%c0_5, %c0_6] : memref<32x48xf32, #tpu.memory_space<vmem>>, vector<32x48xf32>
    %cst = arith.constant dense<0.000000e+00> : vector<16x48xf32>
    %4 = tpu.matmul %0, %2, %cst {dimension_numbers = #tpu.dot_dimension_numbers<[1], [0], [0], [1], [0, 0, 1, 1], [], []>} : vector<16x32xf32>, vector<32x48xf32>, vector<16x48xf32> -> vector<16x48xf32>
    %c0_7 = arith.constant 0 : index
    %c0_8 = arith.constant 0 : index
    %5 = vector.load %arg4[%c0_7, %c0_8] : memref<1x48xf32, #tpu.memory_space<vmem>>, vector<1x48xf32>
    %6 = vector.broadcast %5 : vector<1x48xf32> to vector<16x48xf32>
    %7 = arith.addf %4, %6 : vector<16x48xf32>
    %cst_9 = arith.constant dense<0.000000e+00> : vector<16x48xf32>
    %8 = tpu.matmul %1, %3, %cst_9 {dimension_numbers = #tpu.dot_dimension_numbers<[1], [0], [0], [1], [0, 0, 1, 1], [], []>} : vector<16x32xf32>, vector<32x48xf32>, vector<16x48xf32> -> vector<16x48xf32>
    %c0_10 = arith.constant 0 : index
    %c0_11 = arith.constant 0 : index
    %9 = vector.load %arg6[%c0_10, %c0_11] : memref<1x48xf32, #tpu.memory_space<vmem>>, vector<1x48xf32>
    %10 = vector.broadcast %9 : vector<1x48xf32> to vector<16x48xf32>
    %11 = arith.addf %8, %10 : vector<16x48xf32>
    %12 = arith.mulf %7, %11 : vector<16x48xf32>
    %cst_12 = arith.constant dense<0.000000e+00> : vector<16xf32>
    %13 = vector.multi_reduction <add>, %12, %cst_12 [1] : vector<16x48xf32> to vector<16xf32>
    %14 = vector.shape_cast %13 : vector<16xf32> to vector<16x1xf32>
    %c0_13 = arith.constant 0 : index
    %c0_14 = arith.constant 0 : index
    %15 = vector.load %arg7[%c0_13, %c0_14] : memref<16x40xf32, #tpu.memory_space<vmem>>, vector<16x40xf32>
    %c0_15 = arith.constant 0 : index
    %c0_16 = arith.constant 0 : index
    %16 = vector.load %arg8[%c0_15, %c0_16] : memref<16x40xf32, #tpu.memory_space<vmem>>, vector<16x40xf32>
    %17 = arith.mulf %15, %16 : vector<16x40xf32>
    %cst_17 = arith.constant dense<0.000000e+00> : vector<16xf32>
    %18 = vector.multi_reduction <add>, %17, %cst_17 [1] : vector<16x40xf32> to vector<16xf32>
    %19 = vector.shape_cast %18 : vector<16xf32> to vector<16x1xf32>
    %20 = arith.addf %14, %19 : vector<16x1xf32>
    %cst_18 = arith.constant 5.000000e-01 : f32
    %21 = vector.broadcast %cst_18 : f32 to vector<16x1xf32>
    %22 = arith.mulf %21, %20 : vector<16x1xf32>
    %c0_19 = arith.constant 0 : index
    %c0_20 = arith.constant 0 : index
    %23 = vector.load %arg9[%c0_19, %c0_20] : memref<16x1xf32, #tpu.memory_space<vmem>>, vector<16x1xf32>
    tpu.vector_store %arg9[%c0_19, %c0_20], %22 {strides = array<i32>} : memref<16x1xf32, #tpu.memory_space<vmem>>, vector<16x1xf32>,
    return
  }
  func.func @transform_0(%arg0: i32) -> (i32, i32) {
    %c0_i32 = arith.constant 0 : i32
    %c0_i32_0 = arith.constant 0 : i32
    return %arg0, %c0_i32 : i32, i32
  }
  func.func @transform_1(%arg0: i32) -> (i32, i32) {
    %c0_i32 = arith.constant 0 : i32
    %c0_i32_0 = arith.constant 0 : i32
    return %arg0, %c0_i32 : i32, i32
  }
  func.func @transform_2(%arg0: i32) -> (i32, i32) {
    %c0_i32 = arith.constant 0 : i32
    %c0_i32_0 = arith.constant 0 : i32
    %c0_i32_1 = arith.constant 0 : i32
    return %c0_i32, %c0_i32_0 : i32, i32
  }
  func.func @transform_3(%arg0: i32) -> (i32, i32) {
    %c0_i32 = arith.constant 0 : i32
    %c0_i32_0 = arith.constant 0 : i32
    %c0_i32_1 = arith.constant 0 : i32
    return %c0_i32, %c0_i32_0 : i32, i32
  }
  func.func @transform_4(%arg0: i32) -> (i32, i32) {
    %c0_i32 = arith.constant 0 : i32
    %c0_i32_0 = arith.constant 0 : i32
    %c0_i32_1 = arith.constant 0 : i32
    return %c0_i32, %c0_i32_0 : i32, i32
  }
  func.func @transform_5(%arg0: i32) -> (i32, i32) {
    %c0_i32 = arith.constant 0 : i32
    %c0_i32_0 = arith.constant 0 : i32
    %c0_i32_1 = arith.constant 0 : i32
    return %c0_i32, %c0_i32_0 : i32, i32
  }
  func.func @transform_6(%arg0: i32) -> (i32, i32) {
    %c0_i32 = arith.constant 0 : i32
    %c0_i32_0 = arith.constant 0 : i32
    return %arg0, %c0_i32 : i32, i32
  }
  func.func @transform_7(%arg0: i32) -> (i32, i32) {
    %c0_i32 = arith.constant 0 : i32
    %c0_i32_0 = arith.constant 0 : i32
    return %arg0, %c0_i32 : i32, i32
  }
  func.func @transform_8(%arg0: i32) -> (i32, i32) {
    %c0_i32 = arith.constant 0 : i32
    %c0_i32_0 = arith.constant 0 : i32
    return %arg0, %c0_i32 : i32, i32
  }
}

</mosaic_0001>

<llo_original>
// kernel: tpu_custom_call.1
$region0: #{tpu_custom_call.1}
  #allocation0 [shape = 'u32[]', space=smem, size = 0x4, offset = 0x4, fixed_abs, tag = 'smem constant byte address 0x4 - core index']
  #allocation1 [shape = 'u32[144,128]{1,0:T(1,128)}', space=vmem, size = 0x12000, scoped, tag = 'internal scratch']
  %s0 = inlined_call_operand.hbm [shape: f32[16,32], index: 0, kind: input, shape index: {}]
  %s1 = inlined_call_operand.hbm [shape: f32[16,32], index: 1, kind: input, shape index: {}]
  %s2 = inlined_call_operand.hbm [shape: f32[32,48], index: 2, kind: input, shape index: {}]
  %s3 = inlined_call_operand.vmem [shape: f32[1,48], index: 3, kind: input, shape index: {}]
  %s4 = inlined_call_operand.hbm [shape: f32[32,48], index: 4, kind: input, shape index: {}]
  %s5 = inlined_call_operand.vmem [shape: f32[1,48], index: 5, kind: input, shape index: {}]
  %s6 = inlined_call_operand.hbm [shape: f32[16,40], index: 6, kind: input, shape index: {}]
  %s7 = inlined_call_operand.hbm [shape: f32[16,40], index: 7, kind: input, shape index: {}]
  %s8 = inlined_call_operand.hbm [shape: f32[1,16], index: 8, kind: output, shape index: {}]
  %s9 = sld [smem:[#allocation0]]
  $region66: #{tpu_custom_call.1} parent=0
    _
  %s11 = ssub.s32 1, %s9
  %s12 = scalar_select 0, %s11, %s9
  $region1: #{tpu_custom_call.1} parent=0
    #allocation2 [shape = 'u8[8192]{0}', space=vmem, size = 0x2000, scoped, tag = 'input window, operand 0, single buffered']
    #allocation3 [shape = 's32[1]{0}', space=sflag, size = 0x4, scoped, tag = 'scoped memory for tpu_custom_call.1']
    #allocation4 [shape = 's32[1]{0}', space=sflag, size = 0x4, scoped, tag = 'scoped memory for tpu_custom_call.1']
    #allocation5 [shape = 'u8[8192]{0}', space=vmem, size = 0x2000, scoped, tag = 'input window, operand 1, single buffered']
    #allocation6 [shape = 's32[1]{0}', space=sflag, size = 0x4, scoped, tag = 'scoped memory for tpu_custom_call.1']
    #allocation7 [shape = 'u8[16384]{0}', space=vmem, size = 0x4000, scoped, tag = 'input window, operand 2, single buffered']
    #allocation8 [shape = 'u8[16384]{0}', space=vmem, size = 0x4000, scoped, tag = 'input window, operand 4, single buffered']
    #allocation9 [shape = 's32[1]{0}', space=sflag, size = 0x4, scoped, tag = 'scoped memory for tpu_custom_call.1']
    #allocation10 [shape = 'u8[8192]{0}', space=vmem, size = 0x2000, scoped, tag = 'input window, operand 6, single buffered']
    #allocation11 [shape = 'u8[8192]{0}', space=vmem, size = 0x2000, scoped, tag = 'input window, operand 7, single buffered']
    #allocation12 [shape = 's32[1]{0}', space=sflag, size = 0x4, scoped, tag = 'scoped memory for tpu_custom_call.1']
    #allocation13 [shape = 'u8[512]{0}', space=vmem, size = 0x400, scoped, tag = 'output window, operand 0, single buffered']
    %13 = vsyncpa [#allocation3], 0
    %14 = vsyncpa [#allocation6], 0
    %15 = vsyncpa [#allocation9], 0
    %16 = vsyncpa [#allocation12], 0
    %17 = vsyncpa [#allocation4], 0
    // Predicated region
    $region2: #{tpu_custom_call.1} parent=1 // pred_check
      _
    $region3: #{tpu_custom_call.1} parent=1 // pred_check_branch
      %19 = sbr.rel (0) target = $region5
    $region4: #{tpu_custom_call.1} parent=1 // pred_region
      %s21 = ssub.s32 256, 256
      %22 = vsyncadd [#allocation3], %s21
      %s23 = sshll.u32 [#allocation2], 4
      %s24 = int_to_ptr.vmem [resolvable:$true] %s23
      %29 = dma.hbm_to_vmem [thread:$0]  %s0, 256, %s24, [#allocation3], 128, 128, 8
    $region5: #{tpu_custom_call.1} parent=1 // pred_fallthru
      _
    // Predicated region
    $region6: #{tpu_custom_call.1} parent=1 // pred_check
      _
    $region7: #{tpu_custom_call.1} parent=1 // pred_check_branch
      %31 = sbr.rel (0) target = $region9
    $region8: #{tpu_custom_call.1} parent=1 // pred_region
      %s33 = ssub.s32 256, 256
      %34 = vsyncadd [#allocation6], %s33
      %s35 = sshll.u32 [#allocation5], 4
      %s36 = int_to_ptr.vmem [resolvable:$true] %s35
      %41 = dma.hbm_to_vmem [thread:$0]  %s1, 256, %s36, [#allocation6], 128, 128, 8
    $region9: #{tpu_custom_call.1} parent=1 // pred_fallthru
      _
    // Predicated region
    $region10: #{tpu_custom_call.1} parent=1 // pred_check
      _
    $region11: #{tpu_custom_call.1} parent=1 // pred_check_branch
      %43 = sbr.rel (0) target = $region13
    $region12: #{tpu_custom_call.1} parent=1 // pred_region
      %s45 = ssub.s32 512, 512
      %46 = vsyncadd [#allocation6], %s45
      %s47 = sshll.u32 [#allocation7], 4
      %s48 = int_to_ptr.vmem [resolvable:$true] %s47
      %53 = dma.hbm_to_vmem [thread:$0]  %s2, 512, %s48, [#allocation6], 128, 128, 8
    $region13: #{tpu_custom_call.1} parent=1 // pred_fallthru
      _
    // Predicated region
    $region14: #{tpu_custom_call.1} parent=1 // pred_check
      _
    $region15: #{tpu_custom_call.1} parent=1 // pred_check_branch
      %55 = sbr.rel (0) target = $region17
    $region16: #{tpu_custom_call.1} parent=1 // pred_region
      _
    $region17: #{tpu_custom_call.1} parent=1 // pred_fallthru
      _
    // Predicated region
    $region18: #{tpu_custom_call.1} parent=1 // pred_check
      _
    $region19: #{tpu_custom_call.1} parent=1 // pred_check_branch
      %57 = sbr.rel (0) target = $region21
    $region20: #{tpu_custom_call.1} parent=1 // pred_region
      %s59 = ssub.s32 512, 512
      %60 = vsyncadd [#allocation9], %s59
      %s61 = sshll.u32 [#allocation8], 4
      %s62 = int_to_ptr.vmem [resolvable:$true] %s61
      %67 = dma.hbm_to_vmem [thread:$0]  %s4, 512, %s62, [#allocation9], 128, 128, 8
    $region21: #{tpu_custom_call.1} parent=1 // pred_fallthru
      _
    // Predicated region
    $region22: #{tpu_custom_call.1} parent=1 // pred_check
      _
    $region23: #{tpu_custom_call.1} parent=1 // pred_check_branch
      %69 = sbr.rel (0) target = $region25
    $region24: #{tpu_custom_call.1} parent=1 // pred_region
      _
    $region25: #{tpu_custom_call.1} parent=1 // pred_fallthru
      _
    // Predicated region
    $region26: #{tpu_custom_call.1} parent=1 // pred_check
      _
    $region27: #{tpu_custom_call.1} parent=1 // pred_check_branch
      %71 = sbr.rel (0) target = $region29
    $region28: #{tpu_custom_call.1} parent=1 // pred_region
      %s73 = ssub.s32 256, 256
      %74 = vsyncadd [#allocation9], %s73
      %s75 = sshll.u32 [#allocation10], 4
      %s76 = int_to_ptr.vmem [resolvable:$true] %s75
      %81 = dma.hbm_to_vmem [thread:$0]  %s6, 256, %s76, [#allocation9], 128, 128, 8
    $region29: #{tpu_custom_call.1} parent=1 // pred_fallthru
      _
    // Predicated region
    $region30: #{tpu_custom_call.1} parent=1 // pred_check
      _
    $region31: #{tpu_custom_call.1} parent=1 // pred_check_branch
      %83 = sbr.rel (0) target = $region33
    $region32: #{tpu_custom_call.1} parent=1 // pred_region
      %s85 = ssub.s32 256, 256
      %86 = vsyncadd [#allocation12], %s85
      %s87 = sshll.u32 [#allocation11], 4
      %s88 = int_to_ptr.vmem [resolvable:$true] %s87
      %93 = dma.hbm_to_vmem [thread:$0]  %s7, 256, %s88, [#allocation12], 128, 128, 8
    $region33: #{tpu_custom_call.1} parent=1 // pred_fallthru
      _
    // Predicated region
    $region34: #{tpu_custom_call.1} parent=1 // pred_check
      _
    $region35: #{tpu_custom_call.1} parent=1 // pred_check_branch
      %95 = sbr.rel (0) target = $region37
    $region36: #{tpu_custom_call.1} parent=1 // pred_region
      %96 = dma.done [#allocation3], 256
    $region37: #{tpu_custom_call.1} parent=1 // pred_fallthru
      _
    // Predicated region
    $region38: #{tpu_custom_call.1} parent=1 // pred_check
      _
    $region39: #{tpu_custom_call.1} parent=1 // pred_check_branch
      %98 = sbr.rel (0) target = $region41
    $region40: #{tpu_custom_call.1} parent=1 // pred_region
      %99 = dma.done [#allocation6], 256
    $region41: #{tpu_custom_call.1} parent=1 // pred_fallthru
      _
    // Predicated region
    $region42: #{tpu_custom_call.1} parent=1 // pred_check
      _
    $region43: #{tpu_custom_call.1} parent=1 // pred_check_branch
      %101 = sbr.rel (0) target = $region45
    $region44: #{tpu_custom_call.1} parent=1 // pred_region
      %102 = dma.done [#allocation6], 512
    $region45: #{tpu_custom_call.1} parent=1 // pred_fallthru
      _
    // Predicated region
    $region46: #{tpu_custom_call.1} parent=1 // pred_check
      _
    $region47: #{tpu_custom_call.1} parent=1 // pred_check_branch
      %104 = sbr.rel (0) target = $region49
    $region48: #{tpu_custom_call.1} parent=1 // pred_region
      %105 = dma.done [#allocation9], 512
    $region49: #{tpu_custom_call.1} parent=1 // pred_fallthru
      _
    // Predicated region
    $region50: #{tpu_custom_call.1} parent=1 // pred_check
      _
    $region51: #{tpu_custom_call.1} parent=1 // pred_check_branch
      %107 = sbr.rel (0) target = $region53
    $region52: #{tpu_custom_call.1} parent=1 // pred_region
      %108 = dma.done [#allocation9], 256
    $region53: #{tpu_custom_call.1} parent=1 // pred_fallthru
      _
    // Predicated region
    $region54: #{tpu_custom_call.1} parent=1 // pred_check
      _
    $region55: #{tpu_custom_call.1} parent=1 // pred_check_branch
      %110 = sbr.rel (0) target = $region57
    $region56: #{tpu_custom_call.1} parent=1 // pred_region
      %111 = dma.done [#allocation12], 256
    $region57: #{tpu_custom_call.1} parent=1 // pred_fallthru
      _
    %v112 = vld [vmem:[#allocation2] sm:$0xff]
    %v113 = vld [vmem:[#allocation2 + $0x8] sm:$0xff]
    %v114 = vld [vmem:[#allocation5] sm:$0xff]
    %v115 = vld [vmem:[#allocation5 + $0x8] sm:$0xff]
    %v116 = vld [vmem:[#allocation7] sm:$0xff]
    %v117 = vld [vmem:[#allocation7 + $0x8] sm:$0xff]
    %v118 = vld [vmem:[#allocation7 + $0x10] sm:$0xff]
    %v119 = vld [vmem:[#allocation7 + $0x18] sm:$0xff]
    %v120 = vld [vmem:[#allocation8] sm:$0xff]
    %v121 = vld [vmem:[#allocation8 + $0x8] sm:$0xff]
    %v122 = vld [vmem:[#allocation8 + $0x10] sm:$0xff]
    %v123 = vld [vmem:[#allocation8 + $0x18] sm:$0xff]
    %v124 = vld [vmem:[%s3] sm:$0x1]
    %v126 = vlaneseq
    %v127 = vshrl.u32 %v126, 7
    %v128 = vsub.s32 0, %v127
    %v129 = vrot.slane %v124, %v128
    %vm131 = vcmask 261120
    %v133 = vsel %vm131, %v112, 0
    %v136 = vsel %vm131, %v113, 0
    %138 = vmatprep.subr.mxu0 0.0
    %139 = vmatpush1.msra.mxu0 0.0
    %140 = vmatprep.subr.mxu0 0.0
    %141 = vmatpush1.msra.mxu0 0.0
    %142 = vmatprep.subr.mxu0 0.0
    %143 = vmatpush1.msra.mxu0 0.0
    %144 = vmatprep.subr.mxu0 0.0
    %145 = vmatpush1.msra.mxu0 0.0
    %146 = vmatprep.subr.mxu0 0.0
    %147 = vmatpush1.msra.mxu0 0.0
    %148 = vmatprep.subr.mxu0 0.0
    %149 = vmatpush1.msra.mxu0 0.0
    %150 = vmatprep.subr.mxu0 0.0
    %151 = vmatpush1.msra.mxu0 0.0
    %152 = vmatprep.subr.mxu0 0.0
    %153 = vmatpush1.msra.mxu0 0.0
    %154 = vmatprep.subr.mxu0 0.0
    %155 = vmatpush1.msra.mxu0 0.0
    %156 = vmatprep.subr.mxu0 0.0
    %157 = vmatpush1.msra.mxu0 0.0
    %158 = vmatprep.subr.mxu0 0.0
    %159 = vmatpush1.msra.mxu0 0.0
    %160 = vmatprep.subr.mxu0 0.0
    %161 = vmatpush1.msra.mxu0 0.0
    %162 = vmatprep.subr.mxu0 0.0
    %163 = vmatpush1.msra.mxu0 %v119
    %164 = vmatprep.subr.mxu0 0.0
    %165 = vmatpush1.msra.mxu0 %v118
    %166 = vmatprep.subr.mxu0 0.0
    %167 = vmatpush1.msra.mxu0 %v117
    %168 = vmatprep.subr.mxu0 0.0
    %169 = vmatpush1.msra.mxu0 %v116
    %170 = vmatprep.subr.mxu0 0.0
    %171 = vmatpush2.msra.mxu0 0.0
    %172 = vmatprep.subr.mxu0 0.0
    %173 = vmatpush2.msra.mxu0 0.0
    %174 = vmatprep.subr.mxu0 0.0
    %175 = vmatpush2.msra.mxu0 0.0
    %176 = vmatprep.subr.mxu0 0.0
    %177 = vmatpush2.msra.mxu0 0.0
    %178 = vmatprep.subr.mxu0 0.0
    %179 = vmatpush2.msra.mxu0 0.0
    %180 = vmatprep.subr.mxu0 0.0
    %181 = vmatpush2.msra.mxu0 0.0
    %182 = vmatprep.subr.mxu0 0.0
    %183 = vmatpush2.msra.mxu0 0.0
    %184 = vmatprep.subr.mxu0 0.0
    %185 = vmatpush2.msra.mxu0 0.0
    %186 = vmatprep.subr.mxu0 0.0
    %187 = vmatpush2.msra.mxu0 0.0
    %188 = vmatprep.subr.mxu0 0.0
    %189 = vmatpush2.msra.mxu0 0.0
    %190 = vmatprep.subr.mxu0 0.0
    %191 = vmatpush2.msra.mxu0 0.0
    %192 = vmatprep.subr.mxu0 0.0
    %193 = vmatpush2.msra.mxu0 0.0
    %194 = vmatprep.subr.mxu0 0.0
    %195 = vmatpush2.msra.mxu0 0.0
    %196 = vmatprep.subr.mxu0 0.0
    %197 = vmatpush2.msra.mxu0 0.0
    %198 = vmatprep.subr.mxu0 0.0
    %199 = vmatpush2.msra.mxu0 0.0
    %200 = vmatprep.subr.mxu0 0.0
    %201 = vmatpush2.msra.mxu0 0.0
    %202 = vmatprep.mubr.f32.mxu0 0.0
    %203 = vmatmul.mubr.f32.gmra.mxu0 %v133
    %v204 = vpop.f32.mrf.mxu0
    %v205 = vadd.f32 %v129, %v204
    %v206 = vpop.f32.mrf.mxu0
    %207 = vmatprep.mubr.f32.mxu0 0.0
    %208 = vmatmul.mubr.f32.gmra.mxu0 %v136
    %v209 = vpop.f32.mrf.mxu0
    %v210 = vadd.f32 %v129, %v209
    %v211 = vpop.f32.mrf.mxu0
    %212 = vdwg.mxu0
    %v213 = vld [vmem:[%s5] sm:$0x1]
    %v215 = vlaneseq
    %v216 = vshrl.u32 %v215, 7
    %v217 = vsub.s32 0, %v216
    %v218 = vrot.slane %v213, %v217
    %v221 = vsel %vm131, %v114, 0
    %v224 = vsel %vm131, %v115, 0
    %226 = vmatprep.subr.mxu0 0.0
    %227 = vmatpush1.msra.mxu0 0.0
    %228 = vmatprep.subr.mxu0 0.0
    %229 = vmatpush1.msra.mxu0 0.0
    %230 = vmatprep.subr.mxu0 0.0
    %231 = vmatpush1.msra.mxu0 0.0
    %232 = vmatprep.subr.mxu0 0.0
    %233 = vmatpush1.msra.mxu0 0.0
    %234 = vmatprep.subr.mxu0 0.0
    %235 = vmatpush1.msra.mxu0 0.0
    %236 = vmatprep.subr.mxu0 0.0
    %237 = vmatpush1.msra.mxu0 0.0
    %238 = vmatprep.subr.mxu0 0.0
    %239 = vmatpush1.msra.mxu0 0.0
    %240 = vmatprep.subr.mxu0 0.0
    %241 = vmatpush1.msra.mxu0 0.0
    %242 = vmatprep.subr.mxu0 0.0
    %243 = vmatpush1.msra.mxu0 0.0
    %244 = vmatprep.subr.mxu0 0.0
    %245 = vmatpush1.msra.mxu0 0.0
    %246 = vmatprep.subr.mxu0 0.0
    %247 = vmatpush1.msra.mxu0 0.0
    %248 = vmatprep.subr.mxu0 0.0
    %249 = vmatpush1.msra.mxu0 0.0
    %250 = vmatprep.subr.mxu0 0.0
    %251 = vmatpush1.msra.mxu0 %v123
    %252 = vmatprep.subr.mxu0 0.0
    %253 = vmatpush1.msra.mxu0 %v122
    %254 = vmatprep.subr.mxu0 0.0
    %255 = vmatpush1.msra.mxu0 %v121
    %256 = vmatprep.subr.mxu0 0.0
    %257 = vmatpush1.msra.mxu0 %v120
    %258 = vmatprep.subr.mxu0 0.0
    %259 = vmatpush2.msra.mxu0 0.0
    %260 = vmatprep.subr.mxu0 0.0
    %261 = vmatpush2.msra.mxu0 0.0
    %262 = vmatprep.subr.mxu0 0.0
    %263 = vmatpush2.msra.mxu0 0.0
    %264 = vmatprep.subr.mxu0 0.0
    %265 = vmatpush2.msra.mxu0 0.0
    %266 = vmatprep.subr.mxu0 0.0
    %267 = vmatpush2.msra.mxu0 0.0
    %268 = vmatprep.subr.mxu0 0.0
    %269 = vmatpush2.msra.mxu0 0.0
    %270 = vmatprep.subr.mxu0 0.0
    %271 = vmatpush2.msra.mxu0 0.0
    %272 = vmatprep.subr.mxu0 0.0
    %273 = vmatpush2.msra.mxu0 0.0
    %274 = vmatprep.subr.mxu0 0.0
    %275 = vmatpush2.msra.mxu0 0.0
    %276 = vmatprep.subr.mxu0 0.0
    %277 = vmatpush2.msra.mxu0 0.0
    %278 = vmatprep.subr.mxu0 0.0
    %279 = vmatpush2.msra.mxu0 0.0
    %280 = vmatprep.subr.mxu0 0.0
    %281 = vmatpush2.msra.mxu0 0.0
    %282 = vmatprep.subr.mxu0 0.0
    %283 = vmatpush2.msra.mxu0 0.0
    %284 = vmatprep.subr.mxu0 0.0
    %285 = vmatpush2.msra.mxu0 0.0
    %286 = vmatprep.subr.mxu0 0.0
    %287 = vmatpush2.msra.mxu0 0.0
    %288 = vmatprep.subr.mxu0 0.0
    %289 = vmatpush2.msra.mxu0 0.0
    %290 = vmatprep.mubr.f32.mxu0 0.0
    %291 = vmatmul.mubr.f32.gmra.mxu0 %v221
    %v292 = vpop.f32.mrf.mxu0
    %v293 = vadd.f32 %v218, %v292
    %v294 = vpop.f32.mrf.mxu0
    %295 = vmatprep.mubr.f32.mxu0 0.0
    %296 = vmatmul.mubr.f32.gmra.mxu0 %v224
    %v297 = vpop.f32.mrf.mxu0
    %v298 = vadd.f32 %v218, %v297
    %v299 = vpop.f32.mrf.mxu0
    %300 = vdwg.mxu0
    %v301 = vmul.f32 %v205, %v293
    %v302 = vmul.f32 %v210, %v298
    %vm303 = vcmask 392192
    %v304 = vsel %vm303, %v301, 0.0
    %305 = vadd.xlane.f32.xlu0 %v304
    %v306 = vpop.xlane.xlu0 %305
    %v307 = vsel %vm303, %v302, 0.0
    %308 = vadd.xlane.f32.xlu0 %v307
    %v309 = vpop.xlane.xlu0 %308
    %v310 = vld [vmem:[#allocation10] sm:$0xff]
    %v311 = vld [vmem:[#allocation10 + $0x8] sm:$0xff]
    %v312 = vld [vmem:[#allocation11] sm:$0xff]
    %v313 = vld [vmem:[#allocation11 + $0x8] sm:$0xff]
    %v314 = vmul.f32 %v310, %v312
    %v315 = vmul.f32 %v311, %v313
    %vm316 = vcmask 326656
    %v317 = vsel %vm316, %v314, 0.0
    %318 = vadd.xlane.f32.xlu0 %v317
    %v319 = vpop.xlane.xlu0 %318
    %v320 = vsel %vm316, %v315, 0.0
    %321 = vadd.xlane.f32.xlu0 %v320
    %v322 = vpop.xlane.xlu0 %321
    %v323 = vadd.f32 %v306, %v319
    %v324 = vadd.f32 %v309, %v322
    %v325 = vmul.f32 %v323, 0.5
    %v326 = vmul.f32 %v324, 0.5
    %v329 = vlaneseq
    %v330 = vand.u32 %v329, 127
    %v331 = vlaneseq
    %v332 = vshrl.u32 %v331, 7
    %v333 = vsub.s32 %v330, %v332
    %v334 = vrot.slane %v325, %v333
    %v335 = vadd.s32 %v330, 4294967288
    %v336 = vlaneseq
    %v337 = vshrl.u32 %v336, 7
    %v338 = vsub.s32 %v335, %v337
    %v339 = vrot.slane %v326, %v338
    %vm340 = vcmask 130112
    %v341 = vsel %vm340, %v339, %v334
    %vm343 = vcmask 122880
    %344 = vst.msk [vmem:[#allocation13] sm:$0x1] %vm343, %v341
    // Predicated region
    $region58: #{tpu_custom_call.1} parent=1 // pred_check
      _
    $region59: #{tpu_custom_call.1} parent=1 // pred_check_branch
      %346 = sbr.rel (0) target = $region61
    $region60: #{tpu_custom_call.1} parent=1 // pred_region
      %s348 = ssub.s32 16, 16
      %349 = vsyncadd [#allocation4], %s348
      %s351 = sshll.u32 [#allocation13], 4
      %s352 = int_to_ptr.vmem [resolvable:$true] %s351
      %354 = dma.vmem_to_hbm [thread:$0]  %s352, 16, %s8, [#allocation4]
    $region61: #{tpu_custom_call.1} parent=1 // pred_fallthru
      _
    // Predicated region
    $region62: #{tpu_custom_call.1} parent=1 // pred_check
      _
    $region63: #{tpu_custom_call.1} parent=1 // pred_check_branch
      %356 = sbr.rel (0) target = $region65
    $region64: #{tpu_custom_call.1} parent=1 // pred_region
      %357 = dma.done [#allocation4], 16
    $region65: #{tpu_custom_call.1} parent=1 // pred_fallthru
      _
    %358 = vsyncpa [#allocation3], 1
    %359 = vsyncpa [#allocation6], 1
    %360 = vsyncpa [#allocation9], 1
    %361 = vsyncpa [#allocation12], 1
    %362 = vsyncpa [#allocation4], 1

// kernel: tpu_custom_call.1
$region0: #{tpu_custom_call.1}
  #allocation0 [shape = 'u32[]', space=smem, size = 0x4, offset = 0x4, fixed_abs, tag = 'smem constant byte address 0x4 - core index']
  #allocation1 [shape = 'u32[144,128]{1,0:T(1,128)}', space=vmem, size = 0x12000, scoped, tag = 'internal scratch']
  %s0 = inlined_call_operand.hbm [shape: f32[16,32], index: 0, kind: input, shape index: {}]
  %s1 = inlined_call_operand.hbm [shape: f32[16,32], index: 1, kind: input, shape index: {}]
  %s2 = inlined_call_operand.hbm [shape: f32[32,48], index: 2, kind: input, shape index: {}]
  %s3 = inlined_call_operand.vmem [shape: f32[1,48], index: 3, kind: input, shape index: {}]
  %s4 = inlined_call_operand.hbm [shape: f32[32,48], index: 4, kind: input, shape index: {}]
  %s5 = inlined_call_operand.vmem [shape: f32[1,48], index: 5, kind: input, shape index: {}]
  %s6 = inlined_call_operand.hbm [shape: f32[16,40], index: 6, kind: input, shape index: {}]
  %s7 = inlined_call_operand.hbm [shape: f32[16,40], index: 7, kind: input, shape index: {}]
  %s8 = inlined_call_operand.hbm [shape: f32[1,16], index: 8, kind: output, shape index: {}]
  %s9 = sld [smem:[#allocation0]]
  $region66: #{tpu_custom_call.1} parent=0
    _
  %s11 = ssub.s32 1, %s9
  %s12 = scalar_select 0, %s11, %s9
  $region1: #{tpu_custom_call.1} parent=0
    #allocation2 [shape = 'u8[8192]{0}', space=vmem, size = 0x2000, scoped, tag = 'input window, operand 0, single buffered']
    #allocation3 [shape = 's32[1]{0}', space=sflag, size = 0x4, scoped, tag = 'scoped memory for tpu_custom_call.1']
    #allocation4 [shape = 's32[1]{0}', space=sflag, size = 0x4, scoped, tag = 'scoped memory for tpu_custom_call.1']
    #allocation5 [shape = 'u8[8192]{0}', space=vmem, size = 0x2000, scoped, tag = 'input window, operand 1, single buffered']
    #allocation6 [shape = 's32[1]{0}', space=sflag, size = 0x4, scoped, tag = 'scoped memory for tpu_custom_call.1']
    #allocation7 [shape = 'u8[16384]{0}', space=vmem, size = 0x4000, scoped, tag = 'input window, operand 2, single buffered']
    #allocation8 [shape = 'u8[16384]{0}', space=vmem, size = 0x4000, scoped, tag = 'input window, operand 4, single buffered']
    #allocation9 [shape = 's32[1]{0}', space=sflag, size = 0x4, scoped, tag = 'scoped memory for tpu_custom_call.1']
    #allocation10 [shape = 'u8[8192]{0}', space=vmem, size = 0x2000, scoped, tag = 'input window, operand 6, single buffered']
    #allocation11 [shape = 'u8[8192]{0}', space=vmem, size = 0x2000, scoped, tag = 'input window, operand 7, single buffered']
    #allocation12 [shape = 's32[1]{0}', space=sflag, size = 0x4, scoped, tag = 'scoped memory for tpu_custom_call.1']
    #allocation13 [shape = 'u8[512]{0}', space=vmem, size = 0x400, scoped, tag = 'output window, operand 0, single buffered']
    %13 = vsyncpa [#allocation3], 0
    %14 = vsyncpa [#allocation6], 0
    %15 = vsyncpa [#allocation9], 0
    %16 = vsyncpa [#allocation12], 0
    %17 = vsyncpa [#allocation4], 0
    // Predicated region
    $region2: #{tpu_custom_call.1} parent=1 // pred_check
      _
    $region3: #{tpu_custom_call.1} parent=1 // pred_check_branch
      %19 = sbr.rel (0) target = $region5
    $region4: #{tpu_custom_call.1} parent=1 // pred_region
      %s21 = ssub.s32 256, 256
      %22 = vsyncadd [#allocation3], %s21
      %s23 = sshll.u32 [#allocation2], 4
      %s24 = int_to_ptr.vmem [resolvable:$true] %s23
      %29 = dma.hbm_to_vmem [thread:$0]  %s0, 256, %s24, [#allocation3], 128, 128, 8
    $region5: #{tpu_custom_call.1} parent=1 // pred_fallthru
      _
    // Predicated region
    $region6: #{tpu_custom_call.1} parent=1 // pred_check
      _
    $region7: #{tpu_custom_call.1} parent=1 // pred_check_branch
      %31 = sbr.rel (0) target = $region9
    $region8: #{tpu_custom_call.1} parent=1 // pred_region
      %s33 = ssub.s32 256, 256
      %34 = vsyncadd [#allocation6], %s33
      %s35 = sshll.u32 [#allocation5], 4
      %s36 = int_to_ptr.vmem [resolvable:$true] %s35
      %41 = dma.hbm_to_vmem [thread:$0]  %s1, 256, %s36, [#allocation6], 128, 128, 8
    $region9: #{tpu_custom_call.1} parent=1 // pred_fallthru
      _
    // Predicated region
    $region10: #{tpu_custom_call.1} parent=1 // pred_check
      _
    $region11: #{tpu_custom_call.1} parent=1 // pred_check_branch
      %43 = sbr.rel (0) target = $region13
    $region12: #{tpu_custom_call.1} parent=1 // pred_region
      %s45 = ssub.s32 512, 512
      %46 = vsyncadd [#allocation6], %s45
      %s47 = sshll.u32 [#allocation7], 4
      %s48 = int_to_ptr.vmem [resolvable:$true] %s47
      %53 = dma.hbm_to_vmem [thread:$0]  %s2, 512, %s48, [#allocation6], 128, 128, 8
    $region13: #{tpu_custom_call.1} parent=1 // pred_fallthru
      _
    // Predicated region
    $region14: #{tpu_custom_call.1} parent=1 // pred_check
      _
    $region15: #{tpu_custom_call.1} parent=1 // pred_check_branch
      %55 = sbr.rel (0) target = $region17
    $region16: #{tpu_custom_call.1} parent=1 // pred_region
      _
    $region17: #{tpu_custom_call.1} parent=1 // pred_fallthru
      _
    // Predicated region
    $region18: #{tpu_custom_call.1} parent=1 // pred_check
      _
    $region19: #{tpu_custom_call.1} parent=1 // pred_check_branch
      %57 = sbr.rel (0) target = $region21
    $region20: #{tpu_custom_call.1} parent=1 // pred_region
      %s59 = ssub.s32 512, 512
      %60 = vsyncadd [#allocation9], %s59
      %s61 = sshll.u32 [#allocation8], 4
      %s62 = int_to_ptr.vmem [resolvable:$true] %s61
      %67 = dma.hbm_to_vmem [thread:$0]  %s4, 512, %s62, [#allocation9], 128, 128, 8
    $region21: #{tpu_custom_call.1} parent=1 // pred_fallthru
      _
    // Predicated region
    $region22: #{tpu_custom_call.1} parent=1 // pred_check
      _
    $region23: #{tpu_custom_call.1} parent=1 // pred_check_branch
      %69 = sbr.rel (0) target = $region25
    $region24: #{tpu_custom_call.1} parent=1 // pred_region
      _
    $region25: #{tpu_custom_call.1} parent=1 // pred_fallthru
      _
    // Predicated region
    $region26: #{tpu_custom_call.1} parent=1 // pred_check
      _
    $region27: #{tpu_custom_call.1} parent=1 // pred_check_branch
      %71 = sbr.rel (0) target = $region29
    $region28: #{tpu_custom_call.1} parent=1 // pred_region
      %s73 = ssub.s32 256, 256
      %74 = vsyncadd [#allocation9], %s73
      %s75 = sshll.u32 [#allocation10], 4
      %s76 = int_to_ptr.vmem [resolvable:$true] %s75
      %81 = dma.hbm_to_vmem [thread:$0]  %s6, 256, %s76, [#allocation9], 128, 128, 8
    $region29: #{tpu_custom_call.1} parent=1 // pred_fallthru
      _
    // Predicated region
    $region30: #{tpu_custom_call.1} parent=1 // pred_check
      _
    $region31: #{tpu_custom_call.1} parent=1 // pred_check_branch
      %83 = sbr.rel (0) target = $region33
    $region32: #{tpu_custom_call.1} parent=1 // pred_region
      %s85 = ssub.s32 256, 256
      %86 = vsyncadd [#allocation12], %s85
      %s87 = sshll.u32 [#allocation11], 4
      %s88 = int_to_ptr.vmem [resolvable:$true] %s87
      %93 = dma.hbm_to_vmem [thread:$0]  %s7, 256, %s88, [#allocation12], 128, 128, 8
    $region33: #{tpu_custom_call.1} parent=1 // pred_fallthru
      _
    // Predicated region
    $region34: #{tpu_custom_call.1} parent=1 // pred_check
      _
    $region35: #{tpu_custom_call.1} parent=1 // pred_check_branch
      %95 = sbr.rel (0) target = $region37
    $region36: #{tpu_custom_call.1} parent=1 // pred_region
      %96 = dma.done [#allocation3], 256
    $region37: #{tpu_custom_call.1} parent=1 // pred_fallthru
      _
    // Predicated region
    $region38: #{tpu_custom_call.1} parent=1 // pred_check
      _
    $region39: #{tpu_custom_call.1} parent=1 // pred_check_branch
      %98 = sbr.rel (0) target = $region41
    $region40: #{tpu_custom_call.1} parent=1 // pred_region
      %99 = dma.done [#allocation6], 256
    $region41: #{tpu_custom_call.1} parent=1 // pred_fallthru
      _
    // Predicated region
    $region42: #{tpu_custom_call.1} parent=1 // pred_check
      _
    $region43: #{tpu_custom_call.1} parent=1 // pred_check_branch
      %101 = sbr.rel (0) target = $region45
    $region44: #{tpu_custom_call.1} parent=1 // pred_region
      %102 = dma.done [#allocation6], 512
    $region45: #{tpu_custom_call.1} parent=1 // pred_fallthru
      _
    // Predicated region
    $region46: #{tpu_custom_call.1} parent=1 // pred_check
      _
    $region47: #{tpu_custom_call.1} parent=1 // pred_check_branch
      %104 = sbr.rel (0) target = $region49
    $region48: #{tpu_custom_call.1} parent=1 // pred_region
      %105 = dma.done [#allocation9], 512
    $region49: #{tpu_custom_call.1} parent=1 // pred_fallthru
      _
    // Predicated region
    $region50: #{tpu_custom_call.1} parent=1 // pred_check
      _
    $region51: #{tpu_custom_call.1} parent=1 // pred_check_branch
      %107 = sbr.rel (0) target = $region53
    $region52: #{tpu_custom_call.1} parent=1 // pred_region
      %108 = dma.done [#allocation9], 256
    $region53: #{tpu_custom_call.1} parent=1 // pred_fallthru
      _
    // Predicated region
    $region54: #{tpu_custom_call.1} parent=1 // pred_check
      _
    $region55: #{tpu_custom_call.1} parent=1 // pred_check_branch
      %110 = sbr.rel (0) target = $region57
    $region56: #{tpu_custom_call.1} parent=1 // pred_region
      %111 = dma.done [#allocation12], 256
    $region57: #{tpu_custom_call.1} parent=1 // pred_fallthru
      _
    %v112 = vld [vmem:[#allocation2] sm:$0xff]
    %v113 = vld [vmem:[#allocation2 + $0x8] sm:$0xff]
    %v114 = vld [vmem:[#allocation5] sm:$0xff]
    %v115 = vld [vmem:[#allocation5 + $0x8] sm:$0xff]
    %v116 = vld [vmem:[#allocation7] sm:$0xff]
    %v117 = vld [vmem:[#allocation7 + $0x8] sm:$0xff]
    %v118 = vld [vmem:[#allocation7 + $0x10] sm:$0xff]
    %v119 = vld [vmem:[#allocation7 + $0x18] sm:$0xff]
    %v120 = vld [vmem:[#allocation8] sm:$0xff]
    %v121 = vld [vmem:[#allocation8 + $0x8] sm:$0xff]
    %v122 = vld [vmem:[#allocation8 + $0x10] sm:$0xff]
    %v123 = vld [vmem:[#allocation8 + $0x18] sm:$0xff]
    %v124 = vld [vmem:[%s3] sm:$0x1]
    %v126 = vlaneseq
    %v127 = vshrl.u32 %v126, 7
    %v128 = vsub.s32 0, %v127
    %v129 = vrot.slane %v124, %v128
    %vm131 = vcmask 261120
    %v133 = vsel %vm131, %v112, 0
    %v136 = vsel %vm131, %v113, 0
    %138 = vmatprep.subr.mxu0 0.0
    %139 = vmatpush1.msra.mxu0 0.0
    %140 = vmatprep.subr.mxu0 0.0
    %141 = vmatpush1.msra.mxu0 0.0
    %142 = vmatprep.subr.mxu0 0.0
    %143 = vmatpush1.msra.mxu0 0.0
    %144 = vmatprep.subr.mxu0 0.0
    %145 = vmatpush1.msra.mxu0 0.0
    %146 = vmatprep.subr.mxu0 0.0
    %147 = vmatpush1.msra.mxu0 0.0
    %148 = vmatprep.subr.mxu0 0.0
    %149 = vmatpush1.msra.mxu0 0.0
    %150 = vmatprep.subr.mxu0 0.0
    %151 = vmatpush1.msra.mxu0 0.0
    %152 = vmatprep.subr.mxu0 0.0
    %153 = vmatpush1.msra.mxu0 0.0
    %154 = vmatprep.subr.mxu0 0.0
    %155 = vmatpush1.msra.mxu0 0.0
    %156 = vmatprep.subr.mxu0 0.0
    %157 = vmatpush1.msra.mxu0 0.0
    %158 = vmatprep.subr.mxu0 0.0
    %159 = vmatpush1.msra.mxu0 0.0
    %160 = vmatprep.subr.mxu0 0.0
    %161 = vmatpush1.msra.mxu0 0.0
    %162 = vmatprep.subr.mxu0 0.0
    %163 = vmatpush1.msra.mxu0 %v119
    %164 = vmatprep.subr.mxu0 0.0
    %165 = vmatpush1.msra.mxu0 %v118
    %166 = vmatprep.subr.mxu0 0.0
    %167 = vmatpush1.msra.mxu0 %v117
    %168 = vmatprep.subr.mxu0 0.0
    %169 = vmatpush1.msra.mxu0 %v116
    %170 = vmatprep.subr.mxu0 0.0
    %171 = vmatpush2.msra.mxu0 0.0
    %172 = vmatprep.subr.mxu0 0.0
    %173 = vmatpush2.msra.mxu0 0.0
    %174 = vmatprep.subr.mxu0 0.0
    %175 = vmatpush2.msra.mxu0 0.0
    %176 = vmatprep.subr.mxu0 0.0
    %177 = vmatpush2.msra.mxu0 0.0
    %178 = vmatprep.subr.mxu0 0.0
    %179 = vmatpush2.msra.mxu0 0.0
    %180 = vmatprep.subr.mxu0 0.0
    %181 = vmatpush2.msra.mxu0 0.0
    %182 = vmatprep.subr.mxu0 0.0
    %183 = vmatpush2.msra.mxu0 0.0
    %184 = vmatprep.subr.mxu0 0.0
    %185 = vmatpush2.msra.mxu0 0.0
    %186 = vmatprep.subr.mxu0 0.0
    %187 = vmatpush2.msra.mxu0 0.0
    %188 = vmatprep.subr.mxu0 0.0
    %189 = vmatpush2.msra.mxu0 0.0
    %190 = vmatprep.subr.mxu0 0.0
    %191 = vmatpush2.msra.mxu0 0.0
    %192 = vmatprep.subr.mxu0 0.0
    %193 = vmatpush2.msra.mxu0 0.0
    %194 = vmatprep.subr.mxu0 0.0
    %195 = vmatpush2.msra.mxu0 0.0
    %196 = vmatprep.subr.mxu0 0.0
    %197 = vmatpush2.msra.mxu0 0.0
    %198 = vmatprep.subr.mxu0 0.0
    %199 = vmatpush2.msra.mxu0 0.0
    %200 = vmatprep.subr.mxu0 0.0
    %201 = vmatpush2.msra.mxu0 0.0
    %202 = vmatprep.mubr.f32.mxu0 0.0
    %203 = vmatmul.mubr.f32.gmra.mxu0 %v133
    %v204 = vpop.f32.mrf.mxu0
    %v205 = vadd.f32 %v129, %v204
    %v206 = vpop.f32.mrf.mxu0
    %207 = vmatprep.mubr.f32.mxu0 0.0
    %208 = vmatmul.mubr.f32.gmra.mxu0 %v136
    %v209 = vpop.f32.mrf.mxu0
    %v210 = vadd.f32 %v129, %v209
    %v211 = vpop.f32.mrf.mxu0
    %212 = vdwg.mxu0
    %v213 = vld [vmem:[%s5] sm:$0x1]
    %v215 = vlaneseq
    %v216 = vshrl.u32 %v215, 7
    %v217 = vsub.s32 0, %v216
    %v218 = vrot.slane %v213, %v217
    %v221 = vsel %vm131, %v114, 0
    %v224 = vsel %vm131, %v115, 0
    %226 = vmatprep.subr.mxu0 0.0
    %227 = vmatpush1.msra.mxu0 0.0
    %228 = vmatprep.subr.mxu0 0.0
    %229 = vmatpush1.msra.mxu0 0.0
    %230 = vmatprep.subr.mxu0 0.0
    %231 = vmatpush1.msra.mxu0 0.0
    %232 = vmatprep.subr.mxu0 0.0
    %233 = vmatpush1.msra.mxu0 0.0
    %234 = vmatprep.subr.mxu0 0.0
    %235 = vmatpush1.msra.mxu0 0.0
    %236 = vmatprep.subr.mxu0 0.0
    %237 = vmatpush1.msra.mxu0 0.0
    %238 = vmatprep.subr.mxu0 0.0
    %239 = vmatpush1.msra.mxu0 0.0
    %240 = vmatprep.subr.mxu0 0.0
    %241 = vmatpush1.msra.mxu0 0.0
    %242 = vmatprep.subr.mxu0 0.0
    %243 = vmatpush1.msra.mxu0 0.0
    %244 = vmatprep.subr.mxu0 0.0
    %245 = vmatpush1.msra.mxu0 0.0
    %246 = vmatprep.subr.mxu0 0.0
    %247 = vmatpush1.msra.mxu0 0.0
    %248 = vmatprep.subr.mxu0 0.0
    %249 = vmatpush1.msra.mxu0 0.0
    %250 = vmatprep.subr.mxu0 0.0
    %251 = vmatpush1.msra.mxu0 %v123
    %252 = vmatprep.subr.mxu0 0.0
    %253 = vmatpush1.msra.mxu0 %v122
    %254 = vmatprep.subr.mxu0 0.0
    %255 = vmatpush1.msra.mxu0 %v121
    %256 = vmatprep.subr.mxu0 0.0
    %257 = vmatpush1.msra.mxu0 %v120
    %258 = vmatprep.subr.mxu0 0.0
    %259 = vmatpush2.msra.mxu0 0.0
    %260 = vmatprep.subr.mxu0 0.0
    %261 = vmatpush2.msra.mxu0 0.0
    %262 = vmatprep.subr.mxu0 0.0
    %263 = vmatpush2.msra.mxu0 0.0
    %264 = vmatprep.subr.mxu0 0.0
    %265 = vmatpush2.msra.mxu0 0.0
    %266 = vmatprep.subr.mxu0 0.0
    %267 = vmatpush2.msra.mxu0 0.0
    %268 = vmatprep.subr.mxu0 0.0
    %269 = vmatpush2.msra.mxu0 0.0
    %270 = vmatprep.subr.mxu0 0.0
    %271 = vmatpush2.msra.mxu0 0.0
    %272 = vmatprep.subr.mxu0 0.0
    %273 = vmatpush2.msra.mxu0 0.0
    %274 = vmatprep.subr.mxu0 0.0
    %275 = vmatpush2.msra.mxu0 0.0
    %276 = vmatprep.subr.mxu0 0.0
    %277 = vmatpush2.msra.mxu0 0.0
    %278 = vmatprep.subr.mxu0 0.0
    %279 = vmatpush2.msra.mxu0 0.0
    %280 = vmatprep.subr.mxu0 0.0
    %281 = vmatpush2.msra.mxu0 0.0
    %282 = vmatprep.subr.mxu0 0.0
    %283 = vmatpush2.msra.mxu0 0.0
    %284 = vmatprep.subr.mxu0 0.0
    %285 = vmatpush2.msra.mxu0 0.0
    %286 = vmatprep.subr.mxu0 0.0
    %287 = vmatpush2.msra.mxu0 0.0
    %288 = vmatprep.subr.mxu0 0.0
    %289 = vmatpush2.msra.mxu0 0.0
    %290 = vmatprep.mubr.f32.mxu0 0.0
    %291 = vmatmul.mubr.f32.gmra.mxu0 %v221
    %v292 = vpop.f32.mrf.mxu0
    %v293 = vadd.f32 %v218, %v292
    %v294 = vpop.f32.mrf.mxu0
    %295 = vmatprep.mubr.f32.mxu0 0.0
    %296 = vmatmul.mubr.f32.gmra.mxu0 %v224
    %v297 = vpop.f32.mrf.mxu0
    %v298 = vadd.f32 %v218, %v297
    %v299 = vpop.f32.mrf.mxu0
    %300 = vdwg.mxu0
    %v301 = vmul.f32 %v205, %v293
    %v302 = vmul.f32 %v210, %v298
    %vm303 = vcmask 392192
    %v304 = vsel %vm303, %v301, 0.0
    %305 = vadd.xlane.f32.xlu0 %v304
    %v306 = vpop.xlane.xlu0 %305
    %v307 = vsel %vm303, %v302, 0.0
    %308 = vadd.xlane.f32.xlu0 %v307
    %v309 = vpop.xlane.xlu0 %308
    %v310 = vld [vmem:[#allocation10] sm:$0xff]
    %v311 = vld [vmem:[#allocation10 + $0x8] sm:$0xff]
    %v312 = vld [vmem:[#allocation11] sm:$0xff]
    %v313 = vld [vmem:[#allocation11 + $0x8] sm:$0xff]
    %v314 = vmul.f32 %v310, %v312
    %v315 = vmul.f32 %v311, %v313
    %vm316 = vcmask 326656
    %v317 = vsel %vm316, %v314, 0.0
    %318 = vadd.xlane.f32.xlu0 %v317
    %v319 = vpop.xlane.xlu0 %318
    %v320 = vsel %vm316, %v315, 0.0
    %321 = vadd.xlane.f32.xlu0 %v320
    %v322 = vpop.xlane.xlu0 %321
    %v323 = vadd.f32 %v306, %v319
    %v324 = vadd.f32 %v309, %v322
    %v325 = vmul.f32 %v323, 0.5
    %v326 = vmul.f32 %v324, 0.5
    %v329 = vlaneseq
    %v330 = vand.u32 %v329, 127
    %v331 = vlaneseq
    %v332 = vshrl.u32 %v331, 7
    %v333 = vsub.s32 %v330, %v332
    %v334 = vrot.slane %v325, %v333
    %v335 = vadd.s32 %v330, 4294967288
    %v336 = vlaneseq
    %v337 = vshrl.u32 %v336, 7
    %v338 = vsub.s32 %v335, %v337
    %v339 = vrot.slane %v326, %v338
    %vm340 = vcmask 130112
    %v341 = vsel %vm340, %v339, %v334
    %vm343 = vcmask 122880
    %344 = vst.msk [vmem:[#allocation13] sm:$0x1] %vm343, %v341
    // Predicated region
    $region58: #{tpu_custom_call.1} parent=1 // pred_check
      _
    $region59: #{tpu_custom_call.1} parent=1 // pred_check_branch
      %346 = sbr.rel (0) target = $region61
    $region60: #{tpu_custom_call.1} parent=1 // pred_region
      %s348 = ssub.s32 16, 16
      %349 = vsyncadd [#allocation4], %s348
      %s351 = sshll.u32 [#allocation13], 4
      %s352 = int_to_ptr.vmem [resolvable:$true] %s351
      %354 = dma.vmem_to_hbm [thread:$0]  %s352, 16, %s8, [#allocation4]
    $region61: #{tpu_custom_call.1} parent=1 // pred_fallthru
      _
    // Predicated region
    $region62: #{tpu_custom_call.1} parent=1 // pred_check
      _
    $region63: #{tpu_custom_call.1} parent=1 // pred_check_branch
      %356 = sbr.rel (0) target = $region65
    $region64: #{tpu_custom_call.1} parent=1 // pred_region
      %357 = dma.done [#allocation4], 16
    $region65: #{tpu_custom_call.1} parent=1 // pred_fallthru
      _
    %358 = vsyncpa [#allocation3], 1
    %359 = vsyncpa [#allocation6], 1
    %360 = vsyncpa [#allocation9], 1
    %361 = vsyncpa [#allocation12], 1
    %362 = vsyncpa [#allocation4], 1

// kernel: tpu_custom_call.1
$region0: #{tpu_custom_call.1}
  #allocation0 [shape = 'u32[]', space=smem, size = 0x4, offset = 0x4, fixed_abs, tag = 'smem constant byte address 0x4 - core index']
  #allocation1 [shape = 'u32[144,128]{1,0:T(1,128)}', space=vmem, size = 0x12000, scoped, tag = 'internal scratch']
  %s0 = inlined_call_operand.hbm [shape: f32[16,32], index: 0, kind: input, shape index: {}]
  %s1 = inlined_call_operand.hbm [shape: f32[16,32], index: 1, kind: input, shape index: {}]
  %s2 = inlined_call_operand.hbm [shape: f32[32,48], index: 2, kind: input, shape index: {}]
  %s3 = inlined_call_operand.vmem [shape: f32[1,48], index: 3, kind: input, shape index: {}]
  %s4 = inlined_call_operand.hbm [shape: f32[32,48], index: 4, kind: input, shape index: {}]
  %s5 = inlined_call_operand.vmem [shape: f32[1,48], index: 5, kind: input, shape index: {}]
  %s6 = inlined_call_operand.hbm [shape: f32[16,40], index: 6, kind: input, shape index: {}]
  %s7 = inlined_call_operand.hbm [shape: f32[16,40], index: 7, kind: input, shape index: {}]
  %s8 = inlined_call_operand.vmem [shape: f32[16,1], index: 8, kind: output, shape index: {}]
  %s9 = sld [smem:[#allocation0]]
  $region66: #{tpu_custom_call.1} parent=0
    _
  %s11 = ssub.s32 1, %s9
  %s12 = scalar_select 0, %s11, %s9
  $region1: #{tpu_custom_call.1} parent=0
    #allocation2 [shape = 'u8[8192]{0}', space=vmem, size = 0x2000, scoped, tag = 'input window, operand 0, single buffered']
    #allocation3 [shape = 's32[1]{0}', space=sflag, size = 0x4, scoped, tag = 'scoped memory for tpu_custom_call.1']
    #allocation4 [shape = 'u8[8192]{0}', space=vmem, size = 0x2000, scoped, tag = 'input window, operand 1, single buffered']
    #allocation5 [shape = 's32[1]{0}', space=sflag, size = 0x4, scoped, tag = 'scoped memory for tpu_custom_call.1']
    #allocation6 [shape = 'u8[16384]{0}', space=vmem, size = 0x4000, scoped, tag = 'input window, operand 2, single buffered']
    #allocation7 [shape = 'u8[16384]{0}', space=vmem, size = 0x4000, scoped, tag = 'input window, operand 4, single buffered']
    #allocation8 [shape = 's32[1]{0}', space=sflag, size = 0x4, scoped, tag = 'scoped memory for tpu_custom_call.1']
    #allocation9 [shape = 'u8[8192]{0}', space=vmem, size = 0x2000, scoped, tag = 'input window, operand 6, single buffered']
    #allocation10 [shape = 'u8[8192]{0}', space=vmem, size = 0x2000, scoped, tag = 'input window, operand 7, single buffered']
    #allocation11 [shape = 's32[1]{0}', space=sflag, size = 0x4, scoped, tag = 'scoped memory for tpu_custom_call.1']
    %13 = vsyncpa [#allocation3], 0
    %14 = vsyncpa [#allocation5], 0
    %15 = vsyncpa [#allocation8], 0
    %16 = vsyncpa [#allocation11], 0
    // Predicated region
    $region2: #{tpu_custom_call.1} parent=1 // pred_check
      _
    $region3: #{tpu_custom_call.1} parent=1 // pred_check_branch
      %18 = sbr.rel (0) target = $region5
    $region4: #{tpu_custom_call.1} parent=1 // pred_region
      %s20 = ssub.s32 256, 256
      %21 = vsyncadd [#allocation3], %s20
      %s22 = sshll.u32 [#allocation2], 4
      %s23 = int_to_ptr.vmem [resolvable:$true] %s22
      %28 = dma.hbm_to_vmem [thread:$0]  %s0, 256, %s23, [#allocation3], 128, 128, 8
    $region5: #{tpu_custom_call.1} parent=1 // pred_fallthru
      _
    // Predicated region
    $region6: #{tpu_custom_call.1} parent=1 // pred_check
      _
    $region7: #{tpu_custom_call.1} parent=1 // pred_check_branch
      %30 = sbr.rel (0) target = $region9
    $region8: #{tpu_custom_call.1} parent=1 // pred_region
      %s32 = ssub.s32 256, 256
      %33 = vsyncadd [#allocation5], %s32
      %s34 = sshll.u32 [#allocation4], 4
      %s35 = int_to_ptr.vmem [resolvable:$true] %s34
      %40 = dma.hbm_to_vmem [thread:$0]  %s1, 256, %s35, [#allocation5], 128, 128, 8
    $region9: #{tpu_custom_call.1} parent=1 // pred_fallthru
      _
    // Predicated region
    $region10: #{tpu_custom_call.1} parent=1 // pred_check
      _
    $region11: #{tpu_custom_call.1} parent=1 // pred_check_branch
      %42 = sbr.rel (0) target = $region13
    $region12: #{tpu_custom_call.1} parent=1 // pred_region
      %s44 = ssub.s32 512, 512
      %45 = vsyncadd [#allocation5], %s44
      %s46 = sshll.u32 [#allocation6], 4
      %s47 = int_to_ptr.vmem [resolvable:$true] %s46
      %52 = dma.hbm_to_vmem [thread:$0]  %s2, 512, %s47, [#allocation5], 128, 128, 8
    $region13: #{tpu_custom_call.1} parent=1 // pred_fallthru
      _
    // Predicated region
    $region14: #{tpu_custom_call.1} parent=1 // pred_check
      _
    $region15: #{tpu_custom_call.1} parent=1 // pred_check_branch
      %54 = sbr.rel (0) target = $region17
    $region16: #{tpu_custom_call.1} parent=1 // pred_region
      _
    $region17: #{tpu_custom_call.1} parent=1 // pred_fallthru
      _
    // Predicated region
    $region18: #{tpu_custom_call.1} parent=1 // pred_check
      _
    $region19: #{tpu_custom_call.1} parent=1 // pred_check_branch
      %56 = sbr.rel (0) target = $region21
    $region20: #{tpu_custom_call.1} parent=1 // pred_region
      %s58 = ssub.s32 512, 512
      %59 = vsyncadd [#allocation8], %s58
      %s60 = sshll.u32 [#allocation7], 4
      %s61 = int_to_ptr.vmem [resolvable:$true] %s60
      %66 = dma.hbm_to_vmem [thread:$0]  %s4, 512, %s61, [#allocation8], 128, 128, 8
    $region21: #{tpu_custom_call.1} parent=1 // pred_fallthru
      _
    // Predicated region
    $region22: #{tpu_custom_call.1} parent=1 // pred_check
      _
    $region23: #{tpu_custom_call.1} parent=1 // pred_check_branch
      %68 = sbr.rel (0) target = $region25
    $region24: #{tpu_custom_call.1} parent=1 // pred_region
      _
    $region25: #{tpu_custom_call.1} parent=1 // pred_fallthru
      _
    // Predicated region
    $region26: #{tpu_custom_call.1} parent=1 // pred_check
      _
    $region27: #{tpu_custom_call.1} parent=1 // pred_check_branch
      %70 = sbr.rel (0) target = $region29
    $region28: #{tpu_custom_call.1} parent=1 // pred_region
      %s72 = ssub.s32 256, 256
      %73 = vsyncadd [#allocation8], %s72
      %s74 = sshll.u32 [#allocation9], 4
      %s75 = int_to_ptr.vmem [resolvable:$true] %s74
      %80 = dma.hbm_to_vmem [thread:$0]  %s6, 256, %s75, [#allocation8], 128, 128, 8
    $region29: #{tpu_custom_call.1} parent=1 // pred_fallthru
      _
    // Predicated region
    $region30: #{tpu_custom_call.1} parent=1 // pred_check
      _
    $region31: #{tpu_custom_call.1} parent=1 // pred_check_branch
      %82 = sbr.rel (0) target = $region33
    $region32: #{tpu_custom_call.1} parent=1 // pred_region
      %s84 = ssub.s32 256, 256
      %85 = vsyncadd [#allocation11], %s84
      %s86 = sshll.u32 [#allocation10], 4
      %s87 = int_to_ptr.vmem [resolvable:$true] %s86
      %92 = dma.hbm_to_vmem [thread:$0]  %s7, 256, %s87, [#allocation11], 128, 128, 8
    $region33: #{tpu_custom_call.1} parent=1 // pred_fallthru
      _
    // Predicated region
    $region34: #{tpu_custom_call.1} parent=1 // pred_check
      _
    $region35: #{tpu_custom_call.1} parent=1 // pred_check_branch
      %94 = sbr.rel (0) target = $region37
    $region36: #{tpu_custom_call.1} parent=1 // pred_region
      %95 = dma.done [#allocation3], 256
    $region37: #{tpu_custom_call.1} parent=1 // pred_fallthru
      _
    // Predicated region
    $region38: #{tpu_custom_call.1} parent=1 // pred_check
      _
    $region39: #{tpu_custom_call.1} parent=1 // pred_check_branch
      %97 = sbr.rel (0) target = $region41
    $region40: #{tpu_custom_call.1} parent=1 // pred_region
      %98 = dma.done [#allocation5], 256
    $region41: #{tpu_custom_call.1} parent=1 // pred_fallthru
      _
    // Predicated region
    $region42: #{tpu_custom_call.1} parent=1 // pred_check
      _
    $region43: #{tpu_custom_call.1} parent=1 // pred_check_branch
      %100 = sbr.rel (0) target = $region45
    $region44: #{tpu_custom_call.1} parent=1 // pred_region
      %101 = dma.done [#allocation5], 512
    $region45: #{tpu_custom_call.1} parent=1 // pred_fallthru
      _
    // Predicated region
    $region46: #{tpu_custom_call.1} parent=1 // pred_check
      _
    $region47: #{tpu_custom_call.1} parent=1 // pred_check_branch
      %103 = sbr.rel (0) target = $region49
    $region48: #{tpu_custom_call.1} parent=1 // pred_region
      %104 = dma.done [#allocation8], 512
    $region49: #{tpu_custom_call.1} parent=1 // pred_fallthru
      _
    // Predicated region
    $region50: #{tpu_custom_call.1} parent=1 // pred_check
      _
    $region51: #{tpu_custom_call.1} parent=1 // pred_check_branch
      %106 = sbr.rel (0) target = $region53
    $region52: #{tpu_custom_call.1} parent=1 // pred_region
      %107 = dma.done [#allocation8], 256
    $region53: #{tpu_custom_call.1} parent=1 // pred_fallthru
      _
    // Predicated region
    $region54: #{tpu_custom_call.1} parent=1 // pred_check
      _
    $region55: #{tpu_custom_call.1} parent=1 // pred_check_branch
      %109 = sbr.rel (0) target = $region57
    $region56: #{tpu_custom_call.1} parent=1 // pred_region
      %110 = dma.done [#allocation11], 256
    $region57: #{tpu_custom_call.1} parent=1 // pred_fallthru
      _
    %v111 = vld [vmem:[#allocation2] sm:$0xff]
    %v112 = vld [vmem:[#allocation2 + $0x8] sm:$0xff]
    %v113 = vld [vmem:[#allocation4] sm:$0xff]
    %v114 = vld [vmem:[#allocation4 + $0x8] sm:$0xff]
    %v115 = vld [vmem:[#allocation6] sm:$0xff]
    %v116 = vld [vmem:[#allocation6 + $0x8] sm:$0xff]
    %v117 = vld [vmem:[#allocation6 + $0x10] sm:$0xff]
    %v118 = vld [vmem:[#allocation6 + $0x18] sm:$0xff]
    %v119 = vld [vmem:[#allocation7] sm:$0xff]
    %v120 = vld [vmem:[#allocation7 + $0x8] sm:$0xff]
    %v121 = vld [vmem:[#allocation7 + $0x10] sm:$0xff]
    %v122 = vld [vmem:[#allocation7 + $0x18] sm:$0xff]
    %v123 = vld [vmem:[%s3] sm:$0x1]
    %v125 = vlaneseq
    %v126 = vshrl.u32 %v125, 7
    %v127 = vsub.s32 0, %v126
    %v128 = vrot.slane %v123, %v127
    %vm130 = vcmask 261120
    %v132 = vsel %vm130, %v111, 0
    %v135 = vsel %vm130, %v112, 0
    %137 = vmatprep.subr.mxu0 0.0
    %138 = vmatpush1.msra.mxu0 0.0
    %139 = vmatprep.subr.mxu0 0.0
    %140 = vmatpush1.msra.mxu0 0.0
    %141 = vmatprep.subr.mxu0 0.0
    %142 = vmatpush1.msra.mxu0 0.0
    %143 = vmatprep.subr.mxu0 0.0
    %144 = vmatpush1.msra.mxu0 0.0
    %145 = vmatprep.subr.mxu0 0.0
    %146 = vmatpush1.msra.mxu0 0.0
    %147 = vmatprep.subr.mxu0 0.0
    %148 = vmatpush1.msra.mxu0 0.0
    %149 = vmatprep.subr.mxu0 0.0
    %150 = vmatpush1.msra.mxu0 0.0
    %151 = vmatprep.subr.mxu0 0.0
    %152 = vmatpush1.msra.mxu0 0.0
    %153 = vmatprep.subr.mxu0 0.0
    %154 = vmatpush1.msra.mxu0 0.0
    %155 = vmatprep.subr.mxu0 0.0
    %156 = vmatpush1.msra.mxu0 0.0
    %157 = vmatprep.subr.mxu0 0.0
    %158 = vmatpush1.msra.mxu0 0.0
    %159 = vmatprep.subr.mxu0 0.0
    %160 = vmatpush1.msra.mxu0 0.0
    %161 = vmatprep.subr.mxu0 0.0
    %162 = vmatpush1.msra.mxu0 %v118
    %163 = vmatprep.subr.mxu0 0.0
    %164 = vmatpush1.msra.mxu0 %v117
    %165 = vmatprep.subr.mxu0 0.0
    %166 = vmatpush1.msra.mxu0 %v116
    %167 = vmatprep.subr.mxu0 0.0
    %168 = vmatpush1.msra.mxu0 %v115
    %169 = vmatprep.subr.mxu0 0.0
    %170 = vmatpush2.msra.mxu0 0.0
    %171 = vmatprep.subr.mxu0 0.0
    %172 = vmatpush2.msra.mxu0 0.0
    %173 = vmatprep.subr.mxu0 0.0
    %174 = vmatpush2.msra.mxu0 0.0
    %175 = vmatprep.subr.mxu0 0.0
    %176 = vmatpush2.msra.mxu0 0.0
    %177 = vmatprep.subr.mxu0 0.0
    %178 = vmatpush2.msra.mxu0 0.0
    %179 = vmatprep.subr.mxu0 0.0
    %180 = vmatpush2.msra.mxu0 0.0
    %181 = vmatprep.subr.mxu0 0.0
    %182 = vmatpush2.msra.mxu0 0.0
    %183 = vmatprep.subr.mxu0 0.0
    %184 = vmatpush2.msra.mxu0 0.0
    %185 = vmatprep.subr.mxu0 0.0
    %186 = vmatpush2.msra.mxu0 0.0
    %187 = vmatprep.subr.mxu0 0.0
    %188 = vmatpush2.msra.mxu0 0.0
    %189 = vmatprep.subr.mxu0 0.0
    %190 = vmatpush2.msra.mxu0 0.0
    %191 = vmatprep.subr.mxu0 0.0
    %192 = vmatpush2.msra.mxu0 0.0
    %193 = vmatprep.subr.mxu0 0.0
    %194 = vmatpush2.msra.mxu0 0.0
    %195 = vmatprep.subr.mxu0 0.0
    %196 = vmatpush2.msra.mxu0 0.0
    %197 = vmatprep.subr.mxu0 0.0
    %198 = vmatpush2.msra.mxu0 0.0
    %199 = vmatprep.subr.mxu0 0.0
    %200 = vmatpush2.msra.mxu0 0.0
    %201 = vmatprep.mubr.f32.mxu0 0.0
    %202 = vmatmul.mubr.f32.gmra.mxu0 %v132
    %v203 = vpop.f32.mrf.mxu0
    %v204 = vadd.f32 %v128, %v203
    %v205 = vpop.f32.mrf.mxu0
    %206 = vmatprep.mubr.f32.mxu0 0.0
    %207 = vmatmul.mubr.f32.gmra.mxu0 %v135
    %v208 = vpop.f32.mrf.mxu0
    %v209 = vadd.f32 %v128, %v208
    %v210 = vpop.f32.mrf.mxu0
    %211 = vdwg.mxu0
    %v212 = vld [vmem:[%s5] sm:$0x1]
    %v214 = vlaneseq
    %v215 = vshrl.u32 %v214, 7
    %v216 = vsub.s32 0, %v215
    %v217 = vrot.slane %v212, %v216
    %v220 = vsel %vm130, %v113, 0
    %v223 = vsel %vm130, %v114, 0
    %225 = vmatprep.subr.mxu0 0.0
    %226 = vmatpush1.msra.mxu0 0.0
    %227 = vmatprep.subr.mxu0 0.0
    %228 = vmatpush1.msra.mxu0 0.0
    %229 = vmatprep.subr.mxu0 0.0
    %230 = vmatpush1.msra.mxu0 0.0
    %231 = vmatprep.subr.mxu0 0.0
    %232 = vmatpush1.msra.mxu0 0.0
    %233 = vmatprep.subr.mxu0 0.0
    %234 = vmatpush1.msra.mxu0 0.0
    %235 = vmatprep.subr.mxu0 0.0
    %236 = vmatpush1.msra.mxu0 0.0
    %237 = vmatprep.subr.mxu0 0.0
    %238 = vmatpush1.msra.mxu0 0.0
    %239 = vmatprep.subr.mxu0 0.0
    %240 = vmatpush1.msra.mxu0 0.0
    %241 = vmatprep.subr.mxu0 0.0
    %242 = vmatpush1.msra.mxu0 0.0
    %243 = vmatprep.subr.mxu0 0.0
    %244 = vmatpush1.msra.mxu0 0.0
    %245 = vmatprep.subr.mxu0 0.0
    %246 = vmatpush1.msra.mxu0 0.0
    %247 = vmatprep.subr.mxu0 0.0
    %248 = vmatpush1.msra.mxu0 0.0
    %249 = vmatprep.subr.mxu0 0.0
    %250 = vmatpush1.msra.mxu0 %v122
    %251 = vmatprep.subr.mxu0 0.0
    %252 = vmatpush1.msra.mxu0 %v121
    %253 = vmatprep.subr.mxu0 0.0
    %254 = vmatpush1.msra.mxu0 %v120
    %255 = vmatprep.subr.mxu0 0.0
    %256 = vmatpush1.msra.mxu0 %v119
    %257 = vmatprep.subr.mxu0 0.0
    %258 = vmatpush2.msra.mxu0 0.0
    %259 = vmatprep.subr.mxu0 0.0
    %260 = vmatpush2.msra.mxu0 0.0
    %261 = vmatprep.subr.mxu0 0.0
    %262 = vmatpush2.msra.mxu0 0.0
    %263 = vmatprep.subr.mxu0 0.0
    %264 = vmatpush2.msra.mxu0 0.0
    %265 = vmatprep.subr.mxu0 0.0
    %266 = vmatpush2.msra.mxu0 0.0
    %267 = vmatprep.subr.mxu0 0.0
    %268 = vmatpush2.msra.mxu0 0.0
    %269 = vmatprep.subr.mxu0 0.0
    %270 = vmatpush2.msra.mxu0 0.0
    %271 = vmatprep.subr.mxu0 0.0
    %272 = vmatpush2.msra.mxu0 0.0
    %273 = vmatprep.subr.mxu0 0.0
    %274 = vmatpush2.msra.mxu0 0.0
    %275 = vmatprep.subr.mxu0 0.0
    %276 = vmatpush2.msra.mxu0 0.0
    %277 = vmatprep.subr.mxu0 0.0
    %278 = vmatpush2.msra.mxu0 0.0
    %279 = vmatprep.subr.mxu0 0.0
    %280 = vmatpush2.msra.mxu0 0.0
    %281 = vmatprep.subr.mxu0 0.0
    %282 = vmatpush2.msra.mxu0 0.0
    %283 = vmatprep.subr.mxu0 0.0
    %284 = vmatpush2.msra.mxu0 0.0
    %285 = vmatprep.subr.mxu0 0.0
    %286 = vmatpush2.msra.mxu0 0.0
    %287 = vmatprep.subr.mxu0 0.0
    %288 = vmatpush2.msra.mxu0 0.0
    %289 = vmatprep.mubr.f32.mxu0 0.0
    %290 = vmatmul.mubr.f32.gmra.mxu0 %v220
    %v291 = vpop.f32.mrf.mxu0
    %v292 = vadd.f32 %v217, %v291
    %v293 = vpop.f32.mrf.mxu0
    %294 = vmatprep.mubr.f32.mxu0 0.0
    %295 = vmatmul.mubr.f32.gmra.mxu0 %v223
    %v296 = vpop.f32.mrf.mxu0
    %v297 = vadd.f32 %v217, %v296
    %v298 = vpop.f32.mrf.mxu0
    %299 = vdwg.mxu0
    %v300 = vmul.f32 %v204, %v292
    %v301 = vmul.f32 %v209, %v297
    %vm302 = vcmask 392192
    %v303 = vsel %vm302, %v300, 0.0
    %304 = vadd.xlane.f32.xlu0 %v303
    %v305 = vpop.xlane.xlu0 %304
    %v306 = vsel %vm302, %v301, 0.0
    %307 = vadd.xlane.f32.xlu0 %v306
    %v308 = vpop.xlane.xlu0 %307
    %v309 = vld [vmem:[#allocation9] sm:$0xff]
    %v310 = vld [vmem:[#allocation9 + $0x8] sm:$0xff]
    %v311 = vld [vmem:[#allocation10] sm:$0xff]
    %v312 = vld [vmem:[#allocation10 + $0x8] sm:$0xff]
    %v313 = vmul.f32 %v309, %v311
    %v314 = vmul.f32 %v310, %v312
    %vm315 = vcmask 326656
    %v316 = vsel %vm315, %v313, 0.0
    %317 = vadd.xlane.f32.xlu0 %v316
    %v318 = vpop.xlane.xlu0 %317
    %v319 = vsel %vm315, %v314, 0.0
    %320 = vadd.xlane.f32.xlu0 %v319
    %v321 = vpop.xlane.xlu0 %320
    %v322 = vadd.f32 %v305, %v318
    %v323 = vadd.f32 %v308, %v321
    %v324 = vmul.f32 %v322, 0.5
    %v325 = vmul.f32 %v323, 0.5
    %vm326 = vcmask 7168
    %327 = vst.msk [vmem:[%s8] sm:$0xff] %vm326, %v324
    %328 = vst.msk [vmem:[%s8 + $0x8] sm:$0xff] %vm326, %v325
    // Predicated region
    $region58: #{tpu_custom_call.1} parent=1 // pred_check
      _
    $region59: #{tpu_custom_call.1} parent=1 // pred_check_branch
      %330 = sbr.rel (0) target = $region61
    $region60: #{tpu_custom_call.1} parent=1 // pred_region
      _
    $region61: #{tpu_custom_call.1} parent=1 // pred_fallthru
      _
    // Predicated region
    $region62: #{tpu_custom_call.1} parent=1 // pred_check
      _
    $region63: #{tpu_custom_call.1} parent=1 // pred_check_branch
      %332 = sbr.rel (0) target = $region65
    $region64: #{tpu_custom_call.1} parent=1 // pred_region
      _
    $region65: #{tpu_custom_call.1} parent=1 // pred_fallthru
      _
    %333 = vsyncpa [#allocation3], 1
    %334 = vsyncpa [#allocation5], 1
    %335 = vsyncpa [#allocation8], 1
    %336 = vsyncpa [#allocation11], 1

</llo_original>
